<compile_context>
chip_gen: v5e
topology: v5e:2x2
jax: 0.10.0
libtpu: 0.0.40
codegen_flags: <defaults>
</compile_context>

<pallas_src>
import functools

import jax
import jax.numpy as jnp
import numpy as np
from jax.experimental import pallas as pl
from jax.experimental.pallas import tpu as pltpu


# ---------------------------------------------------------------------------
# Kernel
# ---------------------------------------------------------------------------
def lstm_autoencoder_kernel(x_ref, wie_ref, whe_ref, be_ref,
                            whd_ref, wdcat_ref, cdec0_ref, bd_ref,
                            wz_ref, bz_ref, out_ref):
    T, Bt, E = x_ref.shape
    H = whe_ref.shape[0]
    G = 4 * H                                # fused gate width (i|f|g|o)

    wie = wie_ref[...]        # (E, 4H)   encoder input weights (fused gates)
    whe = whe_ref[...]        # (H, 4H)   encoder hidden weights
    be = be_ref[...]          # (1, 4H)   b_ih_enc + b_hh_enc
    whd = whd_ref[...]        # (H, 4H)   decoder hidden weights (t == 0)
    wdcat = wdcat_ref[...]    # (H, 4H+E) [W_ih_dec + W_hh_dec | W_z]
    cdec0 = cdec0_ref[...]    # (1, 4H)   0.1 * colsum(W_ih_dec) + b_dec
    bd = bd_ref[...]          # (1, 4H)   b_ih_dec + b_hh_dec
    wz = wz_ref[...]          # (H, E)
    bz = bz_ref[...]          # (1, E)

    # Hoisted broadcasts (JAX does not CSE broadcast_in_dim inside the
    # unrolled time loops).
    bd_b = jnp.broadcast_to(bd, (Bt, G))
    bz_b = jnp.broadcast_to(bz, (Bt, E))
    c0_b = jnp.broadcast_to(cdec0, (Bt, G))

    def gates_to_hc(gates, c):
        # PyTorch LSTMCell gate order along the lane axis: i, f, g, o.
        i = jax.nn.sigmoid(gates[:, 0 * H:1 * H])
        f = jax.nn.sigmoid(gates[:, 1 * H:2 * H])
        g = jnp.tanh(gates[:, 2 * H:3 * H])
        o = jax.nn.sigmoid(gates[:, 3 * H:4 * H])
        c_new = f * c + i * g
        h_new = o * jnp.tanh(c_new)
        return h_new, c_new

    # ---------------- encoder ----------------
    # Input projection hoisted out of the recurrence: one (T*Bt, E)@(E, 4H)
    # matmul (bias folded in); the sequential loop only does h @ W_hh.
    xw = jnp.dot(x_ref[...].reshape(T * Bt, E), wie,
                 preferred_element_type=jnp.float32) + be     # (T*Bt, 4H)

    hx = jnp.full((Bt, H), 0.1, jnp.float32)
    cx = jnp.full((Bt, H), 0.1, jnp.float32)
    # TODO(synk): switch to lax.fori_loop (carrying h, c) if time_step grows
    # beyond ~16; full unrolling is fine at T=8.
    for t in range(T):
        gates = xw[t * Bt:(t + 1) * Bt, :] + \
            jnp.dot(hx, whe, preferred_element_type=jnp.float32)
        hx, cx = gates_to_hc(gates, cx)

    # ---------------- decoder ----------------
    h = jnp.tanh(cx)
    c = cx
    zs = []

    # t == 0: input is the 0.1 constant; its projection (+bias) is cdec0.
    gates = jnp.dot(h, whd, preferred_element_type=jnp.float32) + c0_b
    h, c = gates_to_hc(gates, c)

    for t in range(1, T):
        # One fused matmul per step: gates for step t (x_t == h_{t-1}, so
        # W_ih_dec + W_hh_dec are pre-summed) plus the z projection of h_{t-1}
        # appended along the lane axis.
        m = jnp.dot(h, wdcat, preferred_element_type=jnp.float32)  # (Bt, 4H+E)
        zs.append(jnp.tanh(m[:, G:G + E] + bz_b))                  # z_{t-1}
        gates = m[:, 0:G] + bd_b
        h, c = gates_to_hc(gates, c)

    # z for the last hidden state.
    zs.append(jnp.tanh(jnp.dot(h, wz, preferred_element_type=jnp.float32)
                       + bz_b))

    # Single lane-dense store: (Bt, T*E); out[b, t*E:(t+1)*E] = z_t[b].
    out_ref[...] = jnp.concatenate(zs, axis=-1)


# ---------------------------------------------------------------------------
# Wrapper
# ---------------------------------------------------------------------------
def _pick_batch_tile(batch):
    for cand in (64, 32, 16, 8):
        if batch % cand == 0:
            return cand
    return batch


@functools.partial(jax.jit, static_argnames=("time_step",))
def lstm_autoencoder(x, params, *, time_step):
    B, T, E = x.shape
    assert T == time_step
    H = params["w_hh_enc"].shape[0]
    assert params["w_dec_cat"].shape == (H, 4 * H + E)

    b_tile = _pick_batch_tile(B)
    grid = (B // b_tile,)

    # (B, T, E) -> (T, B, E) so per-timestep slices are contiguous in-kernel.
    x_tbe = jnp.transpose(x, (1, 0, 2))

    def full2d(arr):
        r, c = arr.shape
        return pl.BlockSpec((r, c), lambda b: (0, 0))

    in_specs = [
        pl.BlockSpec((T, b_tile, E), lambda b: (0, b, 0)),   # x (batch-tiled)
        full2d(params["w_ih_enc"]),
        full2d(params["w_hh_enc"]),
        full2d(params["b_enc"]),
        full2d(params["w_hh_dec"]),
        full2d(params["w_dec_cat"]),
        full2d(params["c_dec0"]),
        full2d(params["b_dec"]),
        full2d(params["w_z"]),
        full2d(params["b_z"]),
    ]
    out_specs = pl.BlockSpec((b_tile, T * E), lambda b: (b, 0))

    out_flat = pl.pallas_call(
        lstm_autoencoder_kernel,
        out_shape=jax.ShapeDtypeStruct((B, T * E), jnp.float32),
        grid=grid,
        in_specs=in_specs,
        out_specs=out_specs,
        compiler_params=pltpu.CompilerParams(
            dimension_semantics=("parallel",)),
    )(x_tbe,
      params["w_ih_enc"], params["w_hh_enc"], params["b_enc"],
      params["w_hh_dec"], params["w_dec_cat"], params["c_dec0"],
      params["b_dec"], params["w_z"], params["b_z"])

    # (B, T*E) -> (B, T, E): identical memory layout, free reshape.
    return out_flat.reshape(B, T, E)


# ---------------------------------------------------------------------------
# Parameter preparation (PyTorch layout -> fused lane-dense kernel layout)
# ---------------------------------------------------------------------------
def prepare_params(p):
    H = p["w_hh_enc"].shape[1]
    E = p["w_ih_enc"].shape[1]
    b_enc = (p["b_ih_enc"] + p["b_hh_enc"]).reshape(1, 4 * H)
    b_dec = (p["b_ih_dec"] + p["b_hh_dec"]).reshape(1, 4 * H)
    w_dec_fused = (p["w_ih_dec"] + p["w_hh_dec"]).T            # (H, 4H)
    w_z = p["w_z"].T                                           # (H, E)
    return {
        "w_ih_enc": p["w_ih_enc"].T,                           # (E, 4H)
        "w_hh_enc": p["w_hh_enc"].T,                           # (H, 4H)
        "b_enc": b_enc,                                        # (1, 4H)
        "w_hh_dec": p["w_hh_dec"].T,                           # (H, 4H)
        "w_dec_cat": jnp.concatenate([w_dec_fused, w_z], axis=1),  # (H, 4H+E)
        "c_dec0": (0.1 * jnp.sum(p["w_ih_dec"], axis=1)).reshape(1, 4 * H)
                  + b_dec,                                     # (1, 4H)
        "b_dec": b_dec,                                        # (1, 4H)
        "w_z": w_z,                                            # (H, E)
        "b_z": p["b_z"].reshape(1, E),                         # (1, E)
    }


def init_params(key, encoder_input_size, decoder_input_size, hidden_size):
    E, D, H = encoder_input_size, decoder_input_size, hidden_size
    assert D == H, "decoder_input_size must equal hidden_size (h is fed back)"
    ks = jax.random.split(key, 10)
    s = 1.0 / np.sqrt(H)

    def u(k, shape):
        return jax.random.uniform(k, shape, jnp.float32, minval=-s, maxval=s)

    torch_like = dict(
        w_ih_enc=u(ks[0], (4 * H, E)),
        w_hh_enc=u(ks[1], (4 * H, H)),
        b_ih_enc=u(ks[2], (4 * H,)),
        b_hh_enc=u(ks[3], (4 * H,)),
        w_ih_dec=u(ks[4], (4 * H, D)),
        w_hh_dec=u(ks[5], (4 * H, H)),
        b_ih_dec=u(ks[6], (4 * H,)),
        b_hh_dec=u(ks[7], (4 * H,)),
        w_z=u(ks[8], (E, H)),
        b_z=u(ks[9], (E,)),
    )
    return prepare_params(torch_like), torch_like


# ---------------------------------------------------------------------------
# Pure-JAX reference (mirror of the PyTorch forward) for correctness check
# ---------------------------------------------------------------------------
def reference_forward(x, p, hidden_size, time_step):
    H = hidden_size
    B = x.shape[0]

    def cell(xt, h, c, w_ih, w_hh, b_ih, b_hh):
        gates = xt @ w_ih.T + b_ih + h @ w_hh.T + b_hh
        i = jax.nn.sigmoid(gates[:, 0 * H:1 * H])
        f = jax.nn.sigmoid(gates[:, 1 * H:2 * H])
        g = jnp.tanh(gates[:, 2 * H:3 * H])
        o = jax.nn.sigmoid(gates[:, 3 * H:4 * H])
        c_new = f * c + i * g
        return o * jnp.tanh(c_new), c_new

    hx = jnp.full((B, H), 0.1, jnp.float32)
    cx = jnp.full((B, H), 0.1, jnp.float32)
    for t in range(time_step):
        hx, cx = cell(x[:, t, :], hx, cx,
                      p["w_ih_enc"], p["w_hh_enc"], p["b_ih_enc"], p["b_hh_enc"])

    outs = []
    h = jnp.tanh(cx)
    c = cx
    for t in range(time_step):
        inp = jnp.full((B, H), 0.1, jnp.float32) if t == 0 else h
        h, c = cell(inp, h, c,
                    p["w_ih_dec"], p["w_hh_dec"], p["b_ih_dec"], p["b_hh_dec"])
        outs.append(jnp.tanh(h @ p["w_z"].T + p["b_z"]))
    return jnp.transpose(jnp.stack(outs), (1, 0, 2))


# ---------------------------------------------------------------------------
if __name__ == "__main__":
    B, T = 8, 8
    encoder_input_size = 16
    hidden_size = 32
    decoder_input_size = hidden_size

    key = jax.random.PRNGKey(0)
    kx, kp = jax.random.split(key)
    x = jax.random.normal(kx, (B, T, encoder_input_size), jnp.float32)
    params, torch_like = init_params(kp, encoder_input_size,
                                     decoder_input_size, hidden_size)

    out = lstm_autoencoder(x, params, time_step=T)
    out = jax.block_until_ready(out)

    ref = reference_forward(x, torch_like, hidden_size, T)
    assert out.shape == (B, T, encoder_input_size)
    assert np.allclose(np.asarray(out), np.asarray(ref), atol=2e-2, rtol=2e-2), \
        "Pallas output diverges from reference"

    print("KERNEL_OK")
</pallas_src>

<mosaic_0001>
module attributes {stable_mosaic.version = 11 : i64} {
  func.func @lstm_autoencoder_kernel(%arg0: i32, %arg1: memref<8x8x16xf32, #tpu.memory_space<vmem>>, %arg2: memref<16x128xf32, #tpu.memory_space<vmem>>, %arg3: memref<32x128xf32, #tpu.memory_space<vmem>>, %arg4: memref<1x128xf32, #tpu.memory_space<vmem>>, %arg5: memref<32x128xf32, #tpu.memory_space<vmem>>, %arg6: memref<32x144xf32, #tpu.memory_space<vmem>>, %arg7: memref<1x128xf32, #tpu.memory_space<vmem>>, %arg8: memref<1x128xf32, #tpu.memory_space<vmem>>, %arg9: memref<32x16xf32, #tpu.memory_space<vmem>>, %arg10: memref<1x16xf32, #tpu.memory_space<vmem>>, %arg11: memref<8x128xf32, #tpu.memory_space<vmem>>) attributes {dimension_semantics = [#tpu.dimension_semantics<parallel>], iteration_bounds = array<i64: 1>, scalar_prefetch = 0 : i64, scratch_operands = 0 : i64, tpu.core_type = #tpu.core_type<tc>, window_params = [{transform_indices = @transform_0, window_bounds = array<i64: 8, 8, 16>}, {pipeline_mode = #tpu.pipeline_mode<synchronous>, transform_indices = @transform_1, window_bounds = array<i64: 16, 128>}, {pipeline_mode = #tpu.pipeline_mode<synchronous>, transform_indices = @transform_2, window_bounds = array<i64: 32, 128>}, {pipeline_mode = #tpu.pipeline_mode<synchronous>, transform_indices = @transform_3, window_bounds = array<i64: 1, 128>}, {pipeline_mode = #tpu.pipeline_mode<synchronous>, transform_indices = @transform_4, window_bounds = array<i64: 32, 128>}, {pipeline_mode = #tpu.pipeline_mode<synchronous>, transform_indices = @transform_5, window_bounds = array<i64: 32, 144>}, {pipeline_mode = #tpu.pipeline_mode<synchronous>, transform_indices = @transform_6, window_bounds = array<i64: 1, 128>}, {pipeline_mode = #tpu.pipeline_mode<synchronous>, transform_indices = @transform_7, window_bounds = array<i64: 1, 128>}, {pipeline_mode = #tpu.pipeline_mode<synchronous>, transform_indices = @transform_8, window_bounds = array<i64: 32, 16>}, {pipeline_mode = #tpu.pipeline_mode<synchronous>, transform_indices = @transform_9, window_bounds = array<i64: 1, 16>}, {transform_indices = @transform_10, window_bounds = array<i64: 8, 128>}]} {
    %c0 = arith.constant 0 : index
    %c0_0 = arith.constant 0 : index
    %0 = vector.load %arg2[%c0, %c0_0] : memref<16x128xf32, #tpu.memory_space<vmem>>, vector<16x128xf32>
    %c0_1 = arith.constant 0 : index
    %c0_2 = arith.constant 0 : index
    %1 = vector.load %arg3[%c0_1, %c0_2] : memref<32x128xf32, #tpu.memory_space<vmem>>, vector<32x128xf32>
    %c0_3 = arith.constant 0 : index
    %c0_4 = arith.constant 0 : index
    %2 = vector.load %arg4[%c0_3, %c0_4] : memref<1x128xf32, #tpu.memory_space<vmem>>, vector<1x128xf32>
    %c0_5 = arith.constant 0 : index
    %c0_6 = arith.constant 0 : index
    %3 = vector.load %arg5[%c0_5, %c0_6] : memref<32x128xf32, #tpu.memory_space<vmem>>, vector<32x128xf32>
    %c0_7 = arith.constant 0 : index
    %c0_8 = arith.constant 0 : index
    %4 = vector.load %arg6[%c0_7, %c0_8] : memref<32x144xf32, #tpu.memory_space<vmem>>, vector<32x144xf32>
    %c0_9 = arith.constant 0 : index
    %c0_10 = arith.constant 0 : index
    %5 = vector.load %arg7[%c0_9, %c0_10] : memref<1x128xf32, #tpu.memory_space<vmem>>, vector<1x128xf32>
    %c0_11 = arith.constant 0 : index
    %c0_12 = arith.constant 0 : index
    %6 = vector.load %arg8[%c0_11, %c0_12] : memref<1x128xf32, #tpu.memory_space<vmem>>, vector<1x128xf32>
    %c0_13 = arith.constant 0 : index
    %c0_14 = arith.constant 0 : index
    %7 = vector.load %arg9[%c0_13, %c0_14] : memref<32x16xf32, #tpu.memory_space<vmem>>, vector<32x16xf32>
    %c0_15 = arith.constant 0 : index
    %c0_16 = arith.constant 0 : index
    %8 = vector.load %arg10[%c0_15, %c0_16] : memref<1x16xf32, #tpu.memory_space<vmem>>, vector<1x16xf32>
    %9 = vector.shape_cast %6 : vector<1x128xf32> to vector<1x128xf32>
    %10 = vector.broadcast %9 : vector<1x128xf32> to vector<8x128xf32>
    %11 = vector.shape_cast %8 : vector<1x16xf32> to vector<1x16xf32>
    %12 = vector.broadcast %11 : vector<1x16xf32> to vector<8x16xf32>
    %13 = vector.shape_cast %5 : vector<1x128xf32> to vector<1x128xf32>
    %14 = vector.broadcast %13 : vector<1x128xf32> to vector<8x128xf32>
    %c0_17 = arith.constant 0 : index
    %c0_18 = arith.constant 0 : index
    %c0_19 = arith.constant 0 : index
    %15 = vector.load %arg1[%c0_17, %c0_18, %c0_19] : memref<8x8x16xf32, #tpu.memory_space<vmem>>, vector<8x8x16xf32>
    %16 = vector.shape_cast %15 : vector<8x8x16xf32> to vector<64x16xf32>
    %cst = arith.constant dense<0.000000e+00> : vector<64x128xf32>
    %17 = tpu.matmul %16, %0, %cst {dimension_numbers = #tpu.dot_dimension_numbers<[1], [0], [0], [1], [0, 0, 1, 1], [], []>} : vector<64x16xf32>, vector<16x128xf32>, vector<64x128xf32> -> vector<64x128xf32>
    %18 = vector.broadcast %2 : vector<1x128xf32> to vector<64x128xf32>
    %19 = arith.addf %17, %18 : vector<64x128xf32>
    %cst_20 = arith.constant 1.000000e-01 : f32
    %20 = vector.broadcast %cst_20 : f32 to vector<8x32xf32>
    %cst_21 = arith.constant 1.000000e-01 : f32
    %21 = vector.broadcast %cst_21 : f32 to vector<8x32xf32>
    %22 = vector.extract_strided_slice %19 {offsets = [0, 0], sizes = [8, 128], strides = [1, 1]} : vector<64x128xf32> to vector<8x128xf32>
    %cst_22 = arith.constant dense<0.000000e+00> : vector<8x128xf32>
    %23 = tpu.matmul %20, %1, %cst_22 {dimension_numbers = #tpu.dot_dimension_numbers<[1], [0], [0], [1], [0, 0, 1, 1], [], []>} : vector<8x32xf32>, vector<32x128xf32>, vector<8x128xf32> -> vector<8x128xf32>
    %24 = arith.addf %22, %23 : vector<8x128xf32>
    %25 = vector.extract_strided_slice %24 {offsets = [0, 0], sizes = [8, 32], strides = [1, 1]} : vector<8x128xf32> to vector<8x32xf32>
    %26 = arith.negf %25 : vector<8x32xf32>
    %27 = math.exp %26 : vector<8x32xf32>
    %cst_23 = arith.constant 1.000000e+00 : f32
    %28 = vector.broadcast %cst_23 : f32 to vector<8x32xf32>
    %29 = arith.addf %28, %27 : vector<8x32xf32>
    %30 = arith.divf %28, %29 : vector<8x32xf32>
    %31 = vector.extract_strided_slice %24 {offsets = [0, 32], sizes = [8, 32], strides = [1, 1]} : vector<8x128xf32> to vector<8x32xf32>
    %32 = arith.negf %31 : vector<8x32xf32>
    %33 = math.exp %32 : vector<8x32xf32>
    %cst_24 = arith.constant 1.000000e+00 : f32
    %34 = vector.broadcast %cst_24 : f32 to vector<8x32xf32>
    %35 = arith.addf %34, %33 : vector<8x32xf32>
    %36 = arith.divf %34, %35 : vector<8x32xf32>
    %37 = vector.extract_strided_slice %24 {offsets = [0, 64], sizes = [8, 32], strides = [1, 1]} : vector<8x128xf32> to vector<8x32xf32>
    %38 = math.tanh %37 : vector<8x32xf32>
    %39 = vector.extract_strided_slice %24 {offsets = [0, 96], sizes = [8, 32], strides = [1, 1]} : vector<8x128xf32> to vector<8x32xf32>
    %40 = arith.negf %39 : vector<8x32xf32>
    %41 = math.exp %40 : vector<8x32xf32>
    %cst_25 = arith.constant 1.000000e+00 : f32
    %42 = vector.broadcast %cst_25 : f32 to vector<8x32xf32>
    %43 = arith.addf %42, %41 : vector<8x32xf32>
    %44 = arith.divf %42, %43 : vector<8x32xf32>
    %45 = arith.mulf %36, %21 : vector<8x32xf32>
    %46 = arith.mulf %30, %38 : vector<8x32xf32>
    %47 = arith.addf %45, %46 : vector<8x32xf32>
    %48 = math.tanh %47 : vector<8x32xf32>
    %49 = arith.mulf %44, %48 : vector<8x32xf32>
    %50 = vector.extract_strided_slice %19 {offsets = [8, 0], sizes = [8, 128], strides = [1, 1]} : vector<64x128xf32> to vector<8x128xf32>
    %cst_26 = arith.constant dense<0.000000e+00> : vector<8x128xf32>
    %51 = tpu.matmul %49, %1, %cst_26 {dimension_numbers = #tpu.dot_dimension_numbers<[1], [0], [0], [1], [0, 0, 1, 1], [], []>} : vector<8x32xf32>, vector<32x128xf32>, vector<8x128xf32> -> vector<8x128xf32>
    %52 = arith.addf %50, %51 : vector<8x128xf32>
    %53 = vector.extract_strided_slice %52 {offsets = [0, 0], sizes = [8, 32], strides = [1, 1]} : vector<8x128xf32> to vector<8x32xf32>
    %54 = arith.negf %53 : vector<8x32xf32>
    %55 = math.exp %54 : vector<8x32xf32>
    %cst_27 = arith.constant 1.000000e+00 : f32
    %56 = vector.broadcast %cst_27 : f32 to vector<8x32xf32>
    %57 = arith.addf %56, %55 : vector<8x32xf32>
    %58 = arith.divf %56, %57 : vector<8x32xf32>
    %59 = vector.extract_strided_slice %52 {offsets = [0, 32], sizes = [8, 32], strides = [1, 1]} : vector<8x128xf32> to vector<8x32xf32>
    %60 = arith.negf %59 : vector<8x32xf32>
    %61 = math.exp %60 : vector<8x32xf32>
    %cst_28 = arith.constant 1.000000e+00 : f32
    %62 = vector.broadcast %cst_28 : f32 to vector<8x32xf32>
    %63 = arith.addf %62, %61 : vector<8x32xf32>
    %64 = arith.divf %62, %63 : vector<8x32xf32>
    %65 = vector.extract_strided_slice %52 {offsets = [0, 64], sizes = [8, 32], strides = [1, 1]} : vector<8x128xf32> to vector<8x32xf32>
    %66 = math.tanh %65 : vector<8x32xf32>
    %67 = vector.extract_strided_slice %52 {offsets = [0, 96], sizes = [8, 32], strides = [1, 1]} : vector<8x128xf32> to vector<8x32xf32>
    %68 = arith.negf %67 : vector<8x32xf32>
    %69 = math.exp %68 : vector<8x32xf32>
    %cst_29 = arith.constant 1.000000e+00 : f32
    %70 = vector.broadcast %cst_29 : f32 to vector<8x32xf32>
    %71 = arith.addf %70, %69 : vector<8x32xf32>
    %72 = arith.divf %70, %71 : vector<8x32xf32>
    %73 = arith.mulf %64, %47 : vector<8x32xf32>
    %74 = arith.mulf %58, %66 : vector<8x32xf32>
    %75 = arith.addf %73, %74 : vector<8x32xf32>
    %76 = math.tanh %75 : vector<8x32xf32>
    %77 = arith.mulf %72, %76 : vector<8x32xf32>
    %78 = vector.extract_strided_slice %19 {offsets = [16, 0], sizes = [8, 128], strides = [1, 1]} : vector<64x128xf32> to vector<8x128xf32>
    %cst_30 = arith.constant dense<0.000000e+00> : vector<8x128xf32>
    %79 = tpu.matmul %77, %1, %cst_30 {dimension_numbers = #tpu.dot_dimension_numbers<[1], [0], [0], [1], [0, 0, 1, 1], [], []>} : vector<8x32xf32>, vector<32x128xf32>, vector<8x128xf32> -> vector<8x128xf32>
    %80 = arith.addf %78, %79 : vector<8x128xf32>
    %81 = vector.extract_strided_slice %80 {offsets = [0, 0], sizes = [8, 32], strides = [1, 1]} : vector<8x128xf32> to vector<8x32xf32>
    %82 = arith.negf %81 : vector<8x32xf32>
    %83 = math.exp %82 : vector<8x32xf32>
    %cst_31 = arith.constant 1.000000e+00 : f32
    %84 = vector.broadcast %cst_31 : f32 to vector<8x32xf32>
    %85 = arith.addf %84, %83 : vector<8x32xf32>
    %86 = arith.divf %84, %85 : vector<8x32xf32>
    %87 = vector.extract_strided_slice %80 {offsets = [0, 32], sizes = [8, 32], strides = [1, 1]} : vector<8x128xf32> to vector<8x32xf32>
    %88 = arith.negf %87 : vector<8x32xf32>
    %89 = math.exp %88 : vector<8x32xf32>
    %cst_32 = arith.constant 1.000000e+00 : f32
    %90 = vector.broadcast %cst_32 : f32 to vector<8x32xf32>
    %91 = arith.addf %90, %89 : vector<8x32xf32>
    %92 = arith.divf %90, %91 : vector<8x32xf32>
    %93 = vector.extract_strided_slice %80 {offsets = [0, 64], sizes = [8, 32], strides = [1, 1]} : vector<8x128xf32> to vector<8x32xf32>
    %94 = math.tanh %93 : vector<8x32xf32>
    %95 = vector.extract_strided_slice %80 {offsets = [0, 96], sizes = [8, 32], strides = [1, 1]} : vector<8x128xf32> to vector<8x32xf32>
    %96 = arith.negf %95 : vector<8x32xf32>
    %97 = math.exp %96 : vector<8x32xf32>
    %cst_33 = arith.constant 1.000000e+00 : f32
    %98 = vector.broadcast %cst_33 : f32 to vector<8x32xf32>
    %99 = arith.addf %98, %97 : vector<8x32xf32>
    %100 = arith.divf %98, %99 : vector<8x32xf32>
    %101 = arith.mulf %92, %75 : vector<8x32xf32>
    %102 = arith.mulf %86, %94 : vector<8x32xf32>
    %103 = arith.addf %101, %102 : vector<8x32xf32>
    %104 = math.tanh %103 : vector<8x32xf32>
    %105 = arith.mulf %100, %104 : vector<8x32xf32>
    %106 = vector.extract_strided_slice %19 {offsets = [24, 0], sizes = [8, 128], strides = [1, 1]} : vector<64x128xf32> to vector<8x128xf32>
    %cst_34 = arith.constant dense<0.000000e+00> : vector<8x128xf32>
    %107 = tpu.matmul %105, %1, %cst_34 {dimension_numbers = #tpu.dot_dimension_numbers<[1], [0], [0], [1], [0, 0, 1, 1], [], []>} : vector<8x32xf32>, vector<32x128xf32>, vector<8x128xf32> -> vector<8x128xf32>
    %108 = arith.addf %106, %107 : vector<8x128xf32>
    %109 = vector.extract_strided_slice %108 {offsets = [0, 0], sizes = [8, 32], strides = [1, 1]} : vector<8x128xf32> to vector<8x32xf32>
    %110 = arith.negf %109 : vector<8x32xf32>
    %111 = math.exp %110 : vector<8x32xf32>
    %cst_35 = arith.constant 1.000000e+00 : f32
    %112 = vector.broadcast %cst_35 : f32 to vector<8x32xf32>
    %113 = arith.addf %112, %111 : vector<8x32xf32>
    %114 = arith.divf %112, %113 : vector<8x32xf32>
    %115 = vector.extract_strided_slice %108 {offsets = [0, 32], sizes = [8, 32], strides = [1, 1]} : vector<8x128xf32> to vector<8x32xf32>
    %116 = arith.negf %115 : vector<8x32xf32>
    %117 = math.exp %116 : vector<8x32xf32>
    %cst_36 = arith.constant 1.000000e+00 : f32
    %118 = vector.broadcast %cst_36 : f32 to vector<8x32xf32>
    %119 = arith.addf %118, %117 : vector<8x32xf32>
    %120 = arith.divf %118, %119 : vector<8x32xf32>
    %121 = vector.extract_strided_slice %108 {offsets = [0, 64], sizes = [8, 32], strides = [1, 1]} : vector<8x128xf32> to vector<8x32xf32>
    %122 = math.tanh %121 : vector<8x32xf32>
    %123 = vector.extract_strided_slice %108 {offsets = [0, 96], sizes = [8, 32], strides = [1, 1]} : vector<8x128xf32> to vector<8x32xf32>
    %124 = arith.negf %123 : vector<8x32xf32>
    %125 = math.exp %124 : vector<8x32xf32>
    %cst_37 = arith.constant 1.000000e+00 : f32
    %126 = vector.broadcast %cst_37 : f32 to vector<8x32xf32>
    %127 = arith.addf %126, %125 : vector<8x32xf32>
    %128 = arith.divf %126, %127 : vector<8x32xf32>
    %129 = arith.mulf %120, %103 : vector<8x32xf32>
    %130 = arith.mulf %114, %122 : vector<8x32xf32>
    %131 = arith.addf %129, %130 : vector<8x32xf32>
    %132 = math.tanh %131 : vector<8x32xf32>
    %133 = arith.mulf %128, %132 : vector<8x32xf32>
    %134 = vector.extract_strided_slice %19 {offsets = [32, 0], sizes = [8, 128], strides = [1, 1]} : vector<64x128xf32> to vector<8x128xf32>
    %cst_38 = arith.constant dense<0.000000e+00> : vector<8x128xf32>
    %135 = tpu.matmul %133, %1, %cst_38 {dimension_numbers = #tpu.dot_dimension_numbers<[1], [0], [0], [1], [0, 0, 1, 1], [], []>} : vector<8x32xf32>, vector<32x128xf32>, vector<8x128xf32> -> vector<8x128xf32>
    %136 = arith.addf %134, %135 : vector<8x128xf32>
    %137 = vector.extract_strided_slice %136 {offsets = [0, 0], sizes = [8, 32], strides = [1, 1]} : vector<8x128xf32> to vector<8x32xf32>
    %138 = arith.negf %137 : vector<8x32xf32>
    %139 = math.exp %138 : vector<8x32xf32>
    %cst_39 = arith.constant 1.000000e+00 : f32
    %140 = vector.broadcast %cst_39 : f32 to vector<8x32xf32>
    %141 = arith.addf %140, %139 : vector<8x32xf32>
    %142 = arith.divf %140, %141 : vector<8x32xf32>
    %143 = vector.extract_strided_slice %136 {offsets = [0, 32], sizes = [8, 32], strides = [1, 1]} : vector<8x128xf32> to vector<8x32xf32>
    %144 = arith.negf %143 : vector<8x32xf32>
    %145 = math.exp %144 : vector<8x32xf32>
    %cst_40 = arith.constant 1.000000e+00 : f32
    %146 = vector.broadcast %cst_40 : f32 to vector<8x32xf32>
    %147 = arith.addf %146, %145 : vector<8x32xf32>
    %148 = arith.divf %146, %147 : vector<8x32xf32>
    %149 = vector.extract_strided_slice %136 {offsets = [0, 64], sizes = [8, 32], strides = [1, 1]} : vector<8x128xf32> to vector<8x32xf32>
    %150 = math.tanh %149 : vector<8x32xf32>
    %151 = vector.extract_strided_slice %136 {offsets = [0, 96], sizes = [8, 32], strides = [1, 1]} : vector<8x128xf32> to vector<8x32xf32>
    %152 = arith.negf %151 : vector<8x32xf32>
    %153 = math.exp %152 : vector<8x32xf32>
    %cst_41 = arith.constant 1.000000e+00 : f32
    %154 = vector.broadcast %cst_41 : f32 to vector<8x32xf32>
    %155 = arith.addf %154, %153 : vector<8x32xf32>
    %156 = arith.divf %154, %155 : vector<8x32xf32>
    %157 = arith.mulf %148, %131 : vector<8x32xf32>
    %158 = arith.mulf %142, %150 : vector<8x32xf32>
    %159 = arith.addf %157, %158 : vector<8x32xf32>
    %160 = math.tanh %159 : vector<8x32xf32>
    %161 = arith.mulf %156, %160 : vector<8x32xf32>
    %162 = vector.extract_strided_slice %19 {offsets = [40, 0], sizes = [8, 128], strides = [1, 1]} : vector<64x128xf32> to vector<8x128xf32>
    %cst_42 = arith.constant dense<0.000000e+00> : vector<8x128xf32>
    %163 = tpu.matmul %161, %1, %cst_42 {dimension_numbers = #tpu.dot_dimension_numbers<[1], [0], [0], [1], [0, 0, 1, 1], [], []>} : vector<8x32xf32>, vector<32x128xf32>, vector<8x128xf32> -> vector<8x128xf32>
    %164 = arith.addf %162, %163 : vector<8x128xf32>
    %165 = vector.extract_strided_slice %164 {offsets = [0, 0], sizes = [8, 32], strides = [1, 1]} : vector<8x128xf32> to vector<8x32xf32>
    %166 = arith.negf %165 : vector<8x32xf32>
    %167 = math.exp %166 : vector<8x32xf32>
    %cst_43 = arith.constant 1.000000e+00 : f32
    %168 = vector.broadcast %cst_43 : f32 to vector<8x32xf32>
    %169 = arith.addf %168, %167 : vector<8x32xf32>
    %170 = arith.divf %168, %169 : vector<8x32xf32>
    %171 = vector.extract_strided_slice %164 {offsets = [0, 32], sizes = [8, 32], strides = [1, 1]} : vector<8x128xf32> to vector<8x32xf32>
    %172 = arith.negf %171 : vector<8x32xf32>
    %173 = math.exp %172 : vector<8x32xf32>
    %cst_44 = arith.constant 1.000000e+00 : f32
    %174 = vector.broadcast %cst_44 : f32 to vector<8x32xf32>
    %175 = arith.addf %174, %173 : vector<8x32xf32>
    %176 = arith.divf %174, %175 : vector<8x32xf32>
    %177 = vector.extract_strided_slice %164 {offsets = [0, 64], sizes = [8, 32], strides = [1, 1]} : vector<8x128xf32> to vector<8x32xf32>
    %178 = math.tanh %177 : vector<8x32xf32>
    %179 = vector.extract_strided_slice %164 {offsets = [0, 96], sizes = [8, 32], strides = [1, 1]} : vector<8x128xf32> to vector<8x32xf32>
    %180 = arith.negf %179 : vector<8x32xf32>
    %181 = math.exp %180 : vector<8x32xf32>
    %cst_45 = arith.constant 1.000000e+00 : f32
    %182 = vector.broadcast %cst_45 : f32 to vector<8x32xf32>
    %183 = arith.addf %182, %181 : vector<8x32xf32>
    %184 = arith.divf %182, %183 : vector<8x32xf32>
    %185 = arith.mulf %176, %159 : vector<8x32xf32>
    %186 = arith.mulf %170, %178 : vector<8x32xf32>
    %187 = arith.addf %185, %186 : vector<8x32xf32>
    %188 = math.tanh %187 : vector<8x32xf32>
    %189 = arith.mulf %184, %188 : vector<8x32xf32>
    %190 = vector.extract_strided_slice %19 {offsets = [48, 0], sizes = [8, 128], strides = [1, 1]} : vector<64x128xf32> to vector<8x128xf32>
    %cst_46 = arith.constant dense<0.000000e+00> : vector<8x128xf32>
    %191 = tpu.matmul %189, %1, %cst_46 {dimension_numbers = #tpu.dot_dimension_numbers<[1], [0], [0], [1], [0, 0, 1, 1], [], []>} : vector<8x32xf32>, vector<32x128xf32>, vector<8x128xf32> -> vector<8x128xf32>
    %192 = arith.addf %190, %191 : vector<8x128xf32>
    %193 = vector.extract_strided_slice %192 {offsets = [0, 0], sizes = [8, 32], strides = [1, 1]} : vector<8x128xf32> to vector<8x32xf32>
    %194 = arith.negf %193 : vector<8x32xf32>
    %195 = math.exp %194 : vector<8x32xf32>
    %cst_47 = arith.constant 1.000000e+00 : f32
    %196 = vector.broadcast %cst_47 : f32 to vector<8x32xf32>
    %197 = arith.addf %196, %195 : vector<8x32xf32>
    %198 = arith.divf %196, %197 : vector<8x32xf32>
    %199 = vector.extract_strided_slice %192 {offsets = [0, 32], sizes = [8, 32], strides = [1, 1]} : vector<8x128xf32> to vector<8x32xf32>
    %200 = arith.negf %199 : vector<8x32xf32>
    %201 = math.exp %200 : vector<8x32xf32>
    %cst_48 = arith.constant 1.000000e+00 : f32
    %202 = vector.broadcast %cst_48 : f32 to vector<8x32xf32>
    %203 = arith.addf %202, %201 : vector<8x32xf32>
    %204 = arith.divf %202, %203 : vector<8x32xf32>
    %205 = vector.extract_strided_slice %192 {offsets = [0, 64], sizes = [8, 32], strides = [1, 1]} : vector<8x128xf32> to vector<8x32xf32>
    %206 = math.tanh %205 : vector<8x32xf32>
    %207 = vector.extract_strided_slice %192 {offsets = [0, 96], sizes = [8, 32], strides = [1, 1]} : vector<8x128xf32> to vector<8x32xf32>
    %208 = arith.negf %207 : vector<8x32xf32>
    %209 = math.exp %208 : vector<8x32xf32>
    %cst_49 = arith.constant 1.000000e+00 : f32
    %210 = vector.broadcast %cst_49 : f32 to vector<8x32xf32>
    %211 = arith.addf %210, %209 : vector<8x32xf32>
    %212 = arith.divf %210, %211 : vector<8x32xf32>
    %213 = arith.mulf %204, %187 : vector<8x32xf32>
    %214 = arith.mulf %198, %206 : vector<8x32xf32>
    %215 = arith.addf %213, %214 : vector<8x32xf32>
    %216 = math.tanh %215 : vector<8x32xf32>
    %217 = arith.mulf %212, %216 : vector<8x32xf32>
    %218 = vector.extract_strided_slice %19 {offsets = [56, 0], sizes = [8, 128], strides = [1, 1]} : vector<64x128xf32> to vector<8x128xf32>
    %cst_50 = arith.constant dense<0.000000e+00> : vector<8x128xf32>
    %219 = tpu.matmul %217, %1, %cst_50 {dimension_numbers = #tpu.dot_dimension_numbers<[1], [0], [0], [1], [0, 0, 1, 1], [], []>} : vector<8x32xf32>, vector<32x128xf32>, vector<8x128xf32> -> vector<8x128xf32>
    %220 = arith.addf %218, %219 : vector<8x128xf32>
    %221 = vector.extract_strided_slice %220 {offsets = [0, 0], sizes = [8, 32], strides = [1, 1]} : vector<8x128xf32> to vector<8x32xf32>
    %222 = arith.negf %221 : vector<8x32xf32>
    %223 = math.exp %222 : vector<8x32xf32>
    %cst_51 = arith.constant 1.000000e+00 : f32
    %224 = vector.broadcast %cst_51 : f32 to vector<8x32xf32>
    %225 = arith.addf %224, %223 : vector<8x32xf32>
    %226 = arith.divf %224, %225 : vector<8x32xf32>
    %227 = vector.extract_strided_slice %220 {offsets = [0, 32], sizes = [8, 32], strides = [1, 1]} : vector<8x128xf32> to vector<8x32xf32>
    %228 = arith.negf %227 : vector<8x32xf32>
    %229 = math.exp %228 : vector<8x32xf32>
    %cst_52 = arith.constant 1.000000e+00 : f32
    %230 = vector.broadcast %cst_52 : f32 to vector<8x32xf32>
    %231 = arith.addf %230, %229 : vector<8x32xf32>
    %232 = arith.divf %230, %231 : vector<8x32xf32>
    %233 = vector.extract_strided_slice %220 {offsets = [0, 64], sizes = [8, 32], strides = [1, 1]} : vector<8x128xf32> to vector<8x32xf32>
    %234 = math.tanh %233 : vector<8x32xf32>
    %235 = arith.mulf %232, %215 : vector<8x32xf32>
    %236 = arith.mulf %226, %234 : vector<8x32xf32>
    %237 = arith.addf %235, %236 : vector<8x32xf32>
    %238 = math.tanh %237 : vector<8x32xf32>
    %cst_53 = arith.constant dense<0.000000e+00> : vector<8x128xf32>
    %239 = tpu.matmul %238, %3, %cst_53 {dimension_numbers = #tpu.dot_dimension_numbers<[1], [0], [0], [1], [0, 0, 1, 1], [], []>} : vector<8x32xf32>, vector<32x128xf32>, vector<8x128xf32> -> vector<8x128xf32>
    %240 = arith.addf %239, %14 : vector<8x128xf32>
    %241 = vector.extract_strided_slice %240 {offsets = [0, 0], sizes = [8, 32], strides = [1, 1]} : vector<8x128xf32> to vector<8x32xf32>
    %242 = arith.negf %241 : vector<8x32xf32>
    %243 = math.exp %242 : vector<8x32xf32>
    %cst_54 = arith.constant 1.000000e+00 : f32
    %244 = vector.broadcast %cst_54 : f32 to vector<8x32xf32>
    %245 = arith.addf %244, %243 : vector<8x32xf32>
    %246 = arith.divf %244, %245 : vector<8x32xf32>
    %247 = vector.extract_strided_slice %240 {offsets = [0, 32], sizes = [8, 32], strides = [1, 1]} : vector<8x128xf32> to vector<8x32xf32>
    %248 = arith.negf %247 : vector<8x32xf32>
    %249 = math.exp %248 : vector<8x32xf32>
    %cst_55 = arith.constant 1.000000e+00 : f32
    %250 = vector.broadcast %cst_55 : f32 to vector<8x32xf32>
    %251 = arith.addf %250, %249 : vector<8x32xf32>
    %252 = arith.divf %250, %251 : vector<8x32xf32>
    %253 = vector.extract_strided_slice %240 {offsets = [0, 64], sizes = [8, 32], strides = [1, 1]} : vector<8x128xf32> to vector<8x32xf32>
    %254 = math.tanh %253 : vector<8x32xf32>
    %255 = vector.extract_strided_slice %240 {offsets = [0, 96], sizes = [8, 32], strides = [1, 1]} : vector<8x128xf32> to vector<8x32xf32>
    %256 = arith.negf %255 : vector<8x32xf32>
    %257 = math.exp %256 : vector<8x32xf32>
    %cst_56 = arith.constant 1.000000e+00 : f32
    %258 = vector.broadcast %cst_56 : f32 to vector<8x32xf32>
    %259 = arith.addf %258, %257 : vector<8x32xf32>
    %260 = arith.divf %258, %259 : vector<8x32xf32>
    %261 = arith.mulf %252, %237 : vector<8x32xf32>
    %262 = arith.mulf %246, %254 : vector<8x32xf32>
    %263 = arith.addf %261, %262 : vector<8x32xf32>
    %264 = math.tanh %263 : vector<8x32xf32>
    %265 = arith.mulf %260, %264 : vector<8x32xf32>
    %cst_57 = arith.constant dense<0.000000e+00> : vector<8x144xf32>
    %266 = tpu.matmul %265, %4, %cst_57 {dimension_numbers = #tpu.dot_dimension_numbers<[1], [0], [0], [1], [0, 0, 1, 1], [], []>} : vector<8x32xf32>, vector<32x144xf32>, vector<8x144xf32> -> vector<8x144xf32>
    %267 = vector.extract_strided_slice %266 {offsets = [0, 128], sizes = [8, 16], strides = [1, 1]} : vector<8x144xf32> to vector<8x16xf32>
    %268 = arith.addf %267, %12 : vector<8x16xf32>
    %269 = math.tanh %268 : vector<8x16xf32>
    %270 = vector.extract_strided_slice %266 {offsets = [0, 0], sizes = [8, 128], strides = [1, 1]} : vector<8x144xf32> to vector<8x128xf32>
    %271 = arith.addf %270, %10 : vector<8x128xf32>
    %272 = vector.extract_strided_slice %271 {offsets = [0, 0], sizes = [8, 32], strides = [1, 1]} : vector<8x128xf32> to vector<8x32xf32>
    %273 = arith.negf %272 : vector<8x32xf32>
    %274 = math.exp %273 : vector<8x32xf32>
    %cst_58 = arith.constant 1.000000e+00 : f32
    %275 = vector.broadcast %cst_58 : f32 to vector<8x32xf32>
    %276 = arith.addf %275, %274 : vector<8x32xf32>
    %277 = arith.divf %275, %276 : vector<8x32xf32>
    %278 = vector.extract_strided_slice %271 {offsets = [0, 32], sizes = [8, 32], strides = [1, 1]} : vector<8x128xf32> to vector<8x32xf32>
    %279 = arith.negf %278 : vector<8x32xf32>
    %280 = math.exp %279 : vector<8x32xf32>
    %cst_59 = arith.constant 1.000000e+00 : f32
    %281 = vector.broadcast %cst_59 : f32 to vector<8x32xf32>
    %282 = arith.addf %281, %280 : vector<8x32xf32>
    %283 = arith.divf %281, %282 : vector<8x32xf32>
    %284 = vector.extract_strided_slice %271 {offsets = [0, 64], sizes = [8, 32], strides = [1, 1]} : vector<8x128xf32> to vector<8x32xf32>
    %285 = math.tanh %284 : vector<8x32xf32>
    %286 = vector.extract_strided_slice %271 {offsets = [0, 96], sizes = [8, 32], strides = [1, 1]} : vector<8x128xf32> to vector<8x32xf32>
    %287 = arith.negf %286 : vector<8x32xf32>
    %288 = math.exp %287 : vector<8x32xf32>
    %cst_60 = arith.constant 1.000000e+00 : f32
    %289 = vector.broadcast %cst_60 : f32 to vector<8x32xf32>
    %290 = arith.addf %289, %288 : vector<8x32xf32>
    %291 = arith.divf %289, %290 : vector<8x32xf32>
    %292 = arith.mulf %283, %263 : vector<8x32xf32>
    %293 = arith.mulf %277, %285 : vector<8x32xf32>
    %294 = arith.addf %292, %293 : vector<8x32xf32>
    %295 = math.tanh %294 : vector<8x32xf32>
    %296 = arith.mulf %291, %295 : vector<8x32xf32>
    %cst_61 = arith.constant dense<0.000000e+00> : vector<8x144xf32>
    %297 = tpu.matmul %296, %4, %cst_61 {dimension_numbers = #tpu.dot_dimension_numbers<[1], [0], [0], [1], [0, 0, 1, 1], [], []>} : vector<8x32xf32>, vector<32x144xf32>, vector<8x144xf32> -> vector<8x144xf32>
    %298 = vector.extract_strided_slice %297 {offsets = [0, 128], sizes = [8, 16], strides = [1, 1]} : vector<8x144xf32> to vector<8x16xf32>
    %299 = arith.addf %298, %12 : vector<8x16xf32>
    %300 = math.tanh %299 : vector<8x16xf32>
    %301 = vector.extract_strided_slice %297 {offsets = [0, 0], sizes = [8, 128], strides = [1, 1]} : vector<8x144xf32> to vector<8x128xf32>
    %302 = arith.addf %301, %10 : vector<8x128xf32>
    %303 = vector.extract_strided_slice %302 {offsets = [0, 0], sizes = [8, 32], strides = [1, 1]} : vector<8x128xf32> to vector<8x32xf32>
    %304 = arith.negf %303 : vector<8x32xf32>
    %305 = math.exp %304 : vector<8x32xf32>
    %cst_62 = arith.constant 1.000000e+00 : f32
    %306 = vector.broadcast %cst_62 : f32 to vector<8x32xf32>
    %307 = arith.addf %306, %305 : vector<8x32xf32>
    %308 = arith.divf %306, %307 : vector<8x32xf32>
    %309 = vector.extract_strided_slice %302 {offsets = [0, 32], sizes = [8, 32], strides = [1, 1]} : vector<8x128xf32> to vector<8x32xf32>
    %310 = arith.negf %309 : vector<8x32xf32>
    %311 = math.exp %310 : vector<8x32xf32>
    %cst_63 = arith.constant 1.000000e+00 : f32
    %312 = vector.broadcast %cst_63 : f32 to vector<8x32xf32>
    %313 = arith.addf %312, %311 : vector<8x32xf32>
    %314 = arith.divf %312, %313 : vector<8x32xf32>
    %315 = vector.extract_strided_slice %302 {offsets = [0, 64], sizes = [8, 32], strides = [1, 1]} : vector<8x128xf32> to vector<8x32xf32>
    %316 = math.tanh %315 : vector<8x32xf32>
    %317 = vector.extract_strided_slice %302 {offsets = [0, 96], sizes = [8, 32], strides = [1, 1]} : vector<8x128xf32> to vector<8x32xf32>
    %318 = arith.negf %317 : vector<8x32xf32>
    %319 = math.exp %318 : vector<8x32xf32>
    %cst_64 = arith.constant 1.000000e+00 : f32
    %320 = vector.broadcast %cst_64 : f32 to vector<8x32xf32>
    %321 = arith.addf %320, %319 : vector<8x32xf32>
    %322 = arith.divf %320, %321 : vector<8x32xf32>
    %323 = arith.mulf %314, %294 : vector<8x32xf32>
    %324 = arith.mulf %308, %316 : vector<8x32xf32>
    %325 = arith.addf %323, %324 : vector<8x32xf32>
    %326 = math.tanh %325 : vector<8x32xf32>
    %327 = arith.mulf %322, %326 : vector<8x32xf32>
    %cst_65 = arith.constant dense<0.000000e+00> : vector<8x144xf32>
    %328 = tpu.matmul %327, %4, %cst_65 {dimension_numbers = #tpu.dot_dimension_numbers<[1], [0], [0], [1], [0, 0, 1, 1], [], []>} : vector<8x32xf32>, vector<32x144xf32>, vector<8x144xf32> -> vector<8x144xf32>
    %329 = vector.extract_strided_slice %328 {offsets = [0, 128], sizes = [8, 16], strides = [1, 1]} : vector<8x144xf32> to vector<8x16xf32>
    %330 = arith.addf %329, %12 : vector<8x16xf32>
    %331 = math.tanh %330 : vector<8x16xf32>
    %332 = vector.extract_strided_slice %328 {offsets = [0, 0], sizes = [8, 128], strides = [1, 1]} : vector<8x144xf32> to vector<8x128xf32>
    %333 = arith.addf %332, %10 : vector<8x128xf32>
    %334 = vector.extract_strided_slice %333 {offsets = [0, 0], sizes = [8, 32], strides = [1, 1]} : vector<8x128xf32> to vector<8x32xf32>
    %335 = arith.negf %334 : vector<8x32xf32>
    %336 = math.exp %335 : vector<8x32xf32>
    %cst_66 = arith.constant 1.000000e+00 : f32
    %337 = vector.broadcast %cst_66 : f32 to vector<8x32xf32>
    %338 = arith.addf %337, %336 : vector<8x32xf32>
    %339 = arith.divf %337, %338 : vector<8x32xf32>
    %340 = vector.extract_strided_slice %333 {offsets = [0, 32], sizes = [8, 32], strides = [1, 1]} : vector<8x128xf32> to vector<8x32xf32>
    %341 = arith.negf %340 : vector<8x32xf32>
    %342 = math.exp %341 : vector<8x32xf32>
    %cst_67 = arith.constant 1.000000e+00 : f32
    %343 = vector.broadcast %cst_67 : f32 to vector<8x32xf32>
    %344 = arith.addf %343, %342 : vector<8x32xf32>
    %345 = arith.divf %343, %344 : vector<8x32xf32>
    %346 = vector.extract_strided_slice %333 {offsets = [0, 64], sizes = [8, 32], strides = [1, 1]} : vector<8x128xf32> to vector<8x32xf32>
    %347 = math.tanh %346 : vector<8x32xf32>
    %348 = vector.extract_strided_slice %333 {offsets = [0, 96], sizes = [8, 32], strides = [1, 1]} : vector<8x128xf32> to vector<8x32xf32>
    %349 = arith.negf %348 : vector<8x32xf32>
    %350 = math.exp %349 : vector<8x32xf32>
    %cst_68 = arith.constant 1.000000e+00 : f32
    %351 = vector.broadcast %cst_68 : f32 to vector<8x32xf32>
    %352 = arith.addf %351, %350 : vector<8x32xf32>
    %353 = arith.divf %351, %352 : vector<8x32xf32>
    %354 = arith.mulf %345, %325 : vector<8x32xf32>
    %355 = arith.mulf %339, %347 : vector<8x32xf32>
    %356 = arith.addf %354, %355 : vector<8x32xf32>
    %357 = math.tanh %356 : vector<8x32xf32>
    %358 = arith.mulf %353, %357 : vector<8x32xf32>
    %cst_69 = arith.constant dense<0.000000e+00> : vector<8x144xf32>
    %359 = tpu.matmul %358, %4, %cst_69 {dimension_numbers = #tpu.dot_dimension_numbers<[1], [0], [0], [1], [0, 0, 1, 1], [], []>} : vector<8x32xf32>, vector<32x144xf32>, vector<8x144xf32> -> vector<8x144xf32>
    %360 = vector.extract_strided_slice %359 {offsets = [0, 128], sizes = [8, 16], strides = [1, 1]} : vector<8x144xf32> to vector<8x16xf32>
    %361 = arith.addf %360, %12 : vector<8x16xf32>
    %362 = math.tanh %361 : vector<8x16xf32>
    %363 = vector.extract_strided_slice %359 {offsets = [0, 0], sizes = [8, 128], strides = [1, 1]} : vector<8x144xf32> to vector<8x128xf32>
    %364 = arith.addf %363, %10 : vector<8x128xf32>
    %365 = vector.extract_strided_slice %364 {offsets = [0, 0], sizes = [8, 32], strides = [1, 1]} : vector<8x128xf32> to vector<8x32xf32>
    %366 = arith.negf %365 : vector<8x32xf32>
    %367 = math.exp %366 : vector<8x32xf32>
    %cst_70 = arith.constant 1.000000e+00 : f32
    %368 = vector.broadcast %cst_70 : f32 to vector<8x32xf32>
    %369 = arith.addf %368, %367 : vector<8x32xf32>
    %370 = arith.divf %368, %369 : vector<8x32xf32>
    %371 = vector.extract_strided_slice %364 {offsets = [0, 32], sizes = [8, 32], strides = [1, 1]} : vector<8x128xf32> to vector<8x32xf32>
    %372 = arith.negf %371 : vector<8x32xf32>
    %373 = math.exp %372 : vector<8x32xf32>
    %cst_71 = arith.constant 1.000000e+00 : f32
    %374 = vector.broadcast %cst_71 : f32 to vector<8x32xf32>
    %375 = arith.addf %374, %373 : vector<8x32xf32>
    %376 = arith.divf %374, %375 : vector<8x32xf32>
    %377 = vector.extract_strided_slice %364 {offsets = [0, 64], sizes = [8, 32], strides = [1, 1]} : vector<8x128xf32> to vector<8x32xf32>
    %378 = math.tanh %377 : vector<8x32xf32>
    %379 = vector.extract_strided_slice %364 {offsets = [0, 96], sizes = [8, 32], strides = [1, 1]} : vector<8x128xf32> to vector<8x32xf32>
    %380 = arith.negf %379 : vector<8x32xf32>
    %381 = math.exp %380 : vector<8x32xf32>
    %cst_72 = arith.constant 1.000000e+00 : f32
    %382 = vector.broadcast %cst_72 : f32 to vector<8x32xf32>
    %383 = arith.addf %382, %381 : vector<8x32xf32>
    %384 = arith.divf %382, %383 : vector<8x32xf32>
    %385 = arith.mulf %376, %356 : vector<8x32xf32>
    %386 = arith.mulf %370, %378 : vector<8x32xf32>
    %387 = arith.addf %385, %386 : vector<8x32xf32>
    %388 = math.tanh %387 : vector<8x32xf32>
    %389 = arith.mulf %384, %388 : vector<8x32xf32>
    %cst_73 = arith.constant dense<0.000000e+00> : vector<8x144xf32>
    %390 = tpu.matmul %389, %4, %cst_73 {dimension_numbers = #tpu.dot_dimension_numbers<[1], [0], [0], [1], [0, 0, 1, 1], [], []>} : vector<8x32xf32>, vector<32x144xf32>, vector<8x144xf32> -> vector<8x144xf32>
    %391 = vector.extract_strided_slice %390 {offsets = [0, 128], sizes = [8, 16], strides = [1, 1]} : vector<8x144xf32> to vector<8x16xf32>
    %392 = arith.addf %391, %12 : vector<8x16xf32>
    %393 = math.tanh %392 : vector<8x16xf32>
    %394 = vector.extract_strided_slice %390 {offsets = [0, 0], sizes = [8, 128], strides = [1, 1]} : vector<8x144xf32> to vector<8x128xf32>
    %395 = arith.addf %394, %10 : vector<8x128xf32>
    %396 = vector.extract_strided_slice %395 {offsets = [0, 0], sizes = [8, 32], strides = [1, 1]} : vector<8x128xf32> to vector<8x32xf32>
    %397 = arith.negf %396 : vector<8x32xf32>
    %398 = math.exp %397 : vector<8x32xf32>
    %cst_74 = arith.constant 1.000000e+00 : f32
    %399 = vector.broadcast %cst_74 : f32 to vector<8x32xf32>
    %400 = arith.addf %399, %398 : vector<8x32xf32>
    %401 = arith.divf %399, %400 : vector<8x32xf32>
    %402 = vector.extract_strided_slice %395 {offsets = [0, 32], sizes = [8, 32], strides = [1, 1]} : vector<8x128xf32> to vector<8x32xf32>
    %403 = arith.negf %402 : vector<8x32xf32>
    %404 = math.exp %403 : vector<8x32xf32>
    %cst_75 = arith.constant 1.000000e+00 : f32
    %405 = vector.broadcast %cst_75 : f32 to vector<8x32xf32>
    %406 = arith.addf %405, %404 : vector<8x32xf32>
    %407 = arith.divf %405, %406 : vector<8x32xf32>
    %408 = vector.extract_strided_slice %395 {offsets = [0, 64], sizes = [8, 32], strides = [1, 1]} : vector<8x128xf32> to vector<8x32xf32>
    %409 = math.tanh %408 : vector<8x32xf32>
    %410 = vector.extract_strided_slice %395 {offsets = [0, 96], sizes = [8, 32], strides = [1, 1]} : vector<8x128xf32> to vector<8x32xf32>
    %411 = arith.negf %410 : vector<8x32xf32>
    %412 = math.exp %411 : vector<8x32xf32>
    %cst_76 = arith.constant 1.000000e+00 : f32
    %413 = vector.broadcast %cst_76 : f32 to vector<8x32xf32>
    %414 = arith.addf %413, %412 : vector<8x32xf32>
    %415 = arith.divf %413, %414 : vector<8x32xf32>
    %416 = arith.mulf %407, %387 : vector<8x32xf32>
    %417 = arith.mulf %401, %409 : vector<8x32xf32>
    %418 = arith.addf %416, %417 : vector<8x32xf32>
    %419 = math.tanh %418 : vector<8x32xf32>
    %420 = arith.mulf %415, %419 : vector<8x32xf32>
    %cst_77 = arith.constant dense<0.000000e+00> : vector<8x144xf32>
    %421 = tpu.matmul %420, %4, %cst_77 {dimension_numbers = #tpu.dot_dimension_numbers<[1], [0], [0], [1], [0, 0, 1, 1], [], []>} : vector<8x32xf32>, vector<32x144xf32>, vector<8x144xf32> -> vector<8x144xf32>
    %422 = vector.extract_strided_slice %421 {offsets = [0, 128], sizes = [8, 16], strides = [1, 1]} : vector<8x144xf32> to vector<8x16xf32>
    %423 = arith.addf %422, %12 : vector<8x16xf32>
    %424 = math.tanh %423 : vector<8x16xf32>
    %425 = vector.extract_strided_slice %421 {offsets = [0, 0], sizes = [8, 128], strides = [1, 1]} : vector<8x144xf32> to vector<8x128xf32>
    %426 = arith.addf %425, %10 : vector<8x128xf32>
    %427 = vector.extract_strided_slice %426 {offsets = [0, 0], sizes = [8, 32], strides = [1, 1]} : vector<8x128xf32> to vector<8x32xf32>
    %428 = arith.negf %427 : vector<8x32xf32>
    %429 = math.exp %428 : vector<8x32xf32>
    %cst_78 = arith.constant 1.000000e+00 : f32
    %430 = vector.broadcast %cst_78 : f32 to vector<8x32xf32>
    %431 = arith.addf %430, %429 : vector<8x32xf32>
    %432 = arith.divf %430, %431 : vector<8x32xf32>
    %433 = vector.extract_strided_slice %426 {offsets = [0, 32], sizes = [8, 32], strides = [1, 1]} : vector<8x128xf32> to vector<8x32xf32>
    %434 = arith.negf %433 : vector<8x32xf32>
    %435 = math.exp %434 : vector<8x32xf32>
    %cst_79 = arith.constant 1.000000e+00 : f32
    %436 = vector.broadcast %cst_79 : f32 to vector<8x32xf32>
    %437 = arith.addf %436, %435 : vector<8x32xf32>
    %438 = arith.divf %436, %437 : vector<8x32xf32>
    %439 = vector.extract_strided_slice %426 {offsets = [0, 64], sizes = [8, 32], strides = [1, 1]} : vector<8x128xf32> to vector<8x32xf32>
    %440 = math.tanh %439 : vector<8x32xf32>
    %441 = vector.extract_strided_slice %426 {offsets = [0, 96], sizes = [8, 32], strides = [1, 1]} : vector<8x128xf32> to vector<8x32xf32>
    %442 = arith.negf %441 : vector<8x32xf32>
    %443 = math.exp %442 : vector<8x32xf32>
    %cst_80 = arith.constant 1.000000e+00 : f32
    %444 = vector.broadcast %cst_80 : f32 to vector<8x32xf32>
    %445 = arith.addf %444, %443 : vector<8x32xf32>
    %446 = arith.divf %444, %445 : vector<8x32xf32>
    %447 = arith.mulf %438, %418 : vector<8x32xf32>
    %448 = arith.mulf %432, %440 : vector<8x32xf32>
    %449 = arith.addf %447, %448 : vector<8x32xf32>
    %450 = math.tanh %449 : vector<8x32xf32>
    %451 = arith.mulf %446, %450 : vector<8x32xf32>
    %cst_81 = arith.constant dense<0.000000e+00> : vector<8x144xf32>
    %452 = tpu.matmul %451, %4, %cst_81 {dimension_numbers = #tpu.dot_dimension_numbers<[1], [0], [0], [1], [0, 0, 1, 1], [], []>} : vector<8x32xf32>, vector<32x144xf32>, vector<8x144xf32> -> vector<8x144xf32>
    %453 = vector.extract_strided_slice %452 {offsets = [0, 128], sizes = [8, 16], strides = [1, 1]} : vector<8x144xf32> to vector<8x16xf32>
    %454 = arith.addf %453, %12 : vector<8x16xf32>
    %455 = math.tanh %454 : vector<8x16xf32>
    %456 = vector.extract_strided_slice %452 {offsets = [0, 0], sizes = [8, 128], strides = [1, 1]} : vector<8x144xf32> to vector<8x128xf32>
    %457 = arith.addf %456, %10 : vector<8x128xf32>
    %458 = vector.extract_strided_slice %457 {offsets = [0, 0], sizes = [8, 32], strides = [1, 1]} : vector<8x128xf32> to vector<8x32xf32>
    %459 = arith.negf %458 : vector<8x32xf32>
    %460 = math.exp %459 : vector<8x32xf32>
    %cst_82 = arith.constant 1.000000e+00 : f32
    %461 = vector.broadcast %cst_82 : f32 to vector<8x32xf32>
    %462 = arith.addf %461, %460 : vector<8x32xf32>
    %463 = arith.divf %461, %462 : vector<8x32xf32>
    %464 = vector.extract_strided_slice %457 {offsets = [0, 32], sizes = [8, 32], strides = [1, 1]} : vector<8x128xf32> to vector<8x32xf32>
    %465 = arith.negf %464 : vector<8x32xf32>
    %466 = math.exp %465 : vector<8x32xf32>
    %cst_83 = arith.constant 1.000000e+00 : f32
    %467 = vector.broadcast %cst_83 : f32 to vector<8x32xf32>
    %468 = arith.addf %467, %466 : vector<8x32xf32>
    %469 = arith.divf %467, %468 : vector<8x32xf32>
    %470 = vector.extract_strided_slice %457 {offsets = [0, 64], sizes = [8, 32], strides = [1, 1]} : vector<8x128xf32> to vector<8x32xf32>
    %471 = math.tanh %470 : vector<8x32xf32>
    %472 = vector.extract_strided_slice %457 {offsets = [0, 96], sizes = [8, 32], strides = [1, 1]} : vector<8x128xf32> to vector<8x32xf32>
    %473 = arith.negf %472 : vector<8x32xf32>
    %474 = math.exp %473 : vector<8x32xf32>
    %cst_84 = arith.constant 1.000000e+00 : f32
    %475 = vector.broadcast %cst_84 : f32 to vector<8x32xf32>
    %476 = arith.addf %475, %474 : vector<8x32xf32>
    %477 = arith.divf %475, %476 : vector<8x32xf32>
    %478 = arith.mulf %469, %449 : vector<8x32xf32>
    %479 = arith.mulf %463, %471 : vector<8x32xf32>
    %480 = arith.addf %478, %479 : vector<8x32xf32>
    %481 = math.tanh %480 : vector<8x32xf32>
    %482 = arith.mulf %477, %481 : vector<8x32xf32>
    %cst_85 = arith.constant dense<0.000000e+00> : vector<8x16xf32>
    %483 = tpu.matmul %482, %7, %cst_85 {dimension_numbers = #tpu.dot_dimension_numbers<[1], [0], [0], [1], [0, 0, 1, 1], [], []>} : vector<8x32xf32>, vector<32x16xf32>, vector<8x16xf32> -> vector<8x16xf32>
    %484 = arith.addf %483, %12 : vector<8x16xf32>
    %485 = math.tanh %484 : vector<8x16xf32>
    %486 = tpu.concatenate %269, %300, %331, %362, %393, %424, %455, %485 in 1 : vector<8x16xf32>, vector<8x16xf32>, vector<8x16xf32>, vector<8x16xf32>, vector<8x16xf32>, vector<8x16xf32>, vector<8x16xf32>, vector<8x16xf32> -> vector<8x128xf32>
    %c0_86 = arith.constant 0 : index
    %c0_87 = arith.constant 0 : index
    %487 = vector.load %arg11[%c0_86, %c0_87] : memref<8x128xf32, #tpu.memory_space<vmem>>, vector<8x128xf32>
    tpu.vector_store %arg11[%c0_86, %c0_87], %486 {strides = array<i32>} : memref<8x128xf32, #tpu.memory_space<vmem>>, vector<8x128xf32>,
    return
  }
  func.func @transform_0(%arg0: i32) -> (i32, i32, i32) {
    %c0_i32 = arith.constant 0 : i32
    %c0_i32_0 = arith.constant 0 : i32
    %c0_i32_1 = arith.constant 0 : i32
    return %c0_i32, %arg0, %c0_i32_0 : i32, i32, i32
  }
  func.func @transform_1(%arg0: i32) -> (i32, i32) {
    %c0_i32 = arith.constant 0 : i32
    %c0_i32_0 = arith.constant 0 : i32
    %c0_i32_1 = arith.constant 0 : i32
    return %c0_i32, %c0_i32_0 : i32, i32
  }
  func.func @transform_2(%arg0: i32) -> (i32, i32) {
    %c0_i32 = arith.constant 0 : i32
    %c0_i32_0 = arith.constant 0 : i32
    %c0_i32_1 = arith.constant 0 : i32
    return %c0_i32, %c0_i32_0 : i32, i32
  }
  func.func @transform_3(%arg0: i32) -> (i32, i32) {
    %c0_i32 = arith.constant 0 : i32
    %c0_i32_0 = arith.constant 0 : i32
    %c0_i32_1 = arith.constant 0 : i32
    return %c0_i32, %c0_i32_0 : i32, i32
  }
  func.func @transform_4(%arg0: i32) -> (i32, i32) {
    %c0_i32 = arith.constant 0 : i32
    %c0_i32_0 = arith.constant 0 : i32
    %c0_i32_1 = arith.constant 0 : i32
    return %c0_i32, %c0_i32_0 : i32, i32
  }
  func.func @transform_5(%arg0: i32) -> (i32, i32) {
    %c0_i32 = arith.constant 0 : i32
    %c0_i32_0 = arith.constant 0 : i32
    %c0_i32_1 = arith.constant 0 : i32
    return %c0_i32, %c0_i32_0 : i32, i32
  }
  func.func @transform_6(%arg0: i32) -> (i32, i32) {
    %c0_i32 = arith.constant 0 : i32
    %c0_i32_0 = arith.constant 0 : i32
    %c0_i32_1 = arith.constant 0 : i32
    return %c0_i32, %c0_i32_0 : i32, i32
  }
  func.func @transform_7(%arg0: i32) -> (i32, i32) {
    %c0_i32 = arith.constant 0 : i32
    %c0_i32_0 = arith.constant 0 : i32
    %c0_i32_1 = arith.constant 0 : i32
    return %c0_i32, %c0_i32_0 : i32, i32
  }
  func.func @transform_8(%arg0: i32) -> (i32, i32) {
    %c0_i32 = arith.constant 0 : i32
    %c0_i32_0 = arith.constant 0 : i32
    %c0_i32_1 = arith.constant 0 : i32
    return %c0_i32, %c0_i32_0 : i32, i32
  }
  func.func @transform_9(%arg0: i32) -> (i32, i32) {
    %c0_i32 = arith.constant 0 : i32
    %c0_i32_0 = arith.constant 0 : i32
    %c0_i32_1 = arith.constant 0 : i32
    return %c0_i32, %c0_i32_0 : i32, i32
  }
  func.func @transform_10(%arg0: i32) -> (i32, i32) {
    %c0_i32 = arith.constant 0 : i32
    %c0_i32_0 = arith.constant 0 : i32
    return %arg0, %c0_i32 : i32, i32
  }
}

</mosaic_0001>

<llo_original>
// kernel: lstm_autoencoder.1
$region0: #{lstm_autoencoder.1}
  #allocation0 [shape = 'u32[]', space=smem, size = 0x4, offset = 0x4, fixed_abs, tag = 'smem constant byte address 0x4 - core index']
  #allocation1 [shape = 'u32[72,128]{1,0:T(1,128)}', space=vmem, size = 0x9000, scoped, tag = 'internal scratch']
  %s0 = inlined_call_operand.vmem [shape: f32[8,8,16], index: 0, kind: input, shape index: {}]
  %s1 = inlined_call_operand.vmem [shape: f32[16,128], index: 1, kind: input, shape index: {}]
  %s2 = inlined_call_operand.vmem [shape: f32[32,128], index: 2, kind: input, shape index: {}]
  %s3 = inlined_call_operand.vmem [shape: f32[1,128], index: 3, kind: input, shape index: {}]
  %s4 = inlined_call_operand.vmem [shape: f32[32,128], index: 4, kind: input, shape index: {}]
  %s5 = inlined_call_operand.vmem [shape: f32[32,144], index: 5, kind: input, shape index: {}]
  %s6 = inlined_call_operand.vmem [shape: f32[1,128], index: 6, kind: input, shape index: {}]
  %s7 = inlined_call_operand.vmem [shape: f32[1,128], index: 7, kind: input, shape index: {}]
  %s8 = inlined_call_operand.vmem [shape: f32[32,16], index: 8, kind: input, shape index: {}]
  %s9 = inlined_call_operand.vmem [shape: f32[1,16], index: 9, kind: input, shape index: {}]
  %s10 = inlined_call_operand.vmem [shape: f32[8,128], index: 10, kind: output, shape index: {}]
  %s11 = sld [smem:[#allocation0]]
  $region50: #{lstm_autoencoder.1} parent=0
    _
  %s13 = ssub.s32 1, %s11
  %s14 = scalar_select 0, %s13, %s11
  // Predicated region
  $region2: #{lstm_autoencoder.1} parent=0 // pred_check
    _
  $region3: #{lstm_autoencoder.1} parent=0 // pred_check_branch
    %16 = sbr.rel (0) target = $region5
  $region4: #{lstm_autoencoder.1} parent=0 // pred_region
    _
  $region5: #{lstm_autoencoder.1} parent=0 // pred_fallthru
    _
  // Predicated region
  $region6: #{lstm_autoencoder.1} parent=0 // pred_check
    _
  $region7: #{lstm_autoencoder.1} parent=0 // pred_check_branch
    %18 = sbr.rel (0) target = $region9
  $region8: #{lstm_autoencoder.1} parent=0 // pred_region
    _
  $region9: #{lstm_autoencoder.1} parent=0 // pred_fallthru
    _
  // Predicated region
  $region10: #{lstm_autoencoder.1} parent=0 // pred_check
    _
  $region11: #{lstm_autoencoder.1} parent=0 // pred_check_branch
    %20 = sbr.rel (0) target = $region13
  $region12: #{lstm_autoencoder.1} parent=0 // pred_region
    _
  $region13: #{lstm_autoencoder.1} parent=0 // pred_fallthru
    _
  // Predicated region
  $region14: #{lstm_autoencoder.1} parent=0 // pred_check
    _
  $region15: #{lstm_autoencoder.1} parent=0 // pred_check_branch
    %22 = sbr.rel (0) target = $region17
  $region16: #{lstm_autoencoder.1} parent=0 // pred_region
    _
  $region17: #{lstm_autoencoder.1} parent=0 // pred_fallthru
    _
  // Predicated region
  $region18: #{lstm_autoencoder.1} parent=0 // pred_check
    _
  $region19: #{lstm_autoencoder.1} parent=0 // pred_check_branch
    %24 = sbr.rel (0) target = $region21
  $region20: #{lstm_autoencoder.1} parent=0 // pred_region
    _
  $region21: #{lstm_autoencoder.1} parent=0 // pred_fallthru
    _
  // Predicated region
  $region22: #{lstm_autoencoder.1} parent=0 // pred_check
    _
  $region23: #{lstm_autoencoder.1} parent=0 // pred_check_branch
    %26 = sbr.rel (0) target = $region25
  $region24: #{lstm_autoencoder.1} parent=0 // pred_region
    _
  $region25: #{lstm_autoencoder.1} parent=0 // pred_fallthru
    _
  // Predicated region
  $region26: #{lstm_autoencoder.1} parent=0 // pred_check
    _
  $region27: #{lstm_autoencoder.1} parent=0 // pred_check_branch
    %28 = sbr.rel (0) target = $region29
  $region28: #{lstm_autoencoder.1} parent=0 // pred_region
    _
  $region29: #{lstm_autoencoder.1} parent=0 // pred_fallthru
    _
  // Predicated region
  $region30: #{lstm_autoencoder.1} parent=0 // pred_check
    _
  $region31: #{lstm_autoencoder.1} parent=0 // pred_check_branch
    %30 = sbr.rel (0) target = $region33
  $region32: #{lstm_autoencoder.1} parent=0 // pred_region
    _
  $region33: #{lstm_autoencoder.1} parent=0 // pred_fallthru
    _
  // Predicated region
  $region34: #{lstm_autoencoder.1} parent=0 // pred_check
    _
  $region35: #{lstm_autoencoder.1} parent=0 // pred_check_branch
    %32 = sbr.rel (0) target = $region37
  $region36: #{lstm_autoencoder.1} parent=0 // pred_region
    _
  $region37: #{lstm_autoencoder.1} parent=0 // pred_fallthru
    _
  // Predicated region
  $region38: #{lstm_autoencoder.1} parent=0 // pred_check
    _
  $region39: #{lstm_autoencoder.1} parent=0 // pred_check_branch
    %34 = sbr.rel (0) target = $region41
  $region40: #{lstm_autoencoder.1} parent=0 // pred_region
    _
  $region41: #{lstm_autoencoder.1} parent=0 // pred_fallthru
    _
  %v35 = vld [vmem:[%s1] sm:$0xff]
  %v36 = vld [vmem:[%s1 + $0x8] sm:$0xff]
  %v37 = vld [vmem:[%s2] sm:$0xff]
  %v38 = vld [vmem:[%s2 + $0x8] sm:$0xff]
  %v39 = vld [vmem:[%s2 + $0x10] sm:$0xff]
  %v40 = vld [vmem:[%s2 + $0x18] sm:$0xff]
  %v41 = vld [vmem:[%s3] sm:$0x1]
  %v42 = vld [vmem:[%s4] sm:$0xff]
  %v43 = vld [vmem:[%s4 + $0x8] sm:$0xff]
  %v44 = vld [vmem:[%s4 + $0x10] sm:$0xff]
  %v45 = vld [vmem:[%s4 + $0x18] sm:$0xff]
  %v46 = vld [vmem:[%s5] sm:$0xff]
  %v47 = vld [vmem:[%s5 + $0x8] sm:$0xff]
  %v48 = vld [vmem:[%s5 + $0x10] sm:$0xff]
  %v49 = vld [vmem:[%s5 + $0x18] sm:$0xff]
  %v50 = vld [vmem:[%s5 + $0x20] sm:$0xff]
  %v51 = vld [vmem:[%s5 + $0x28] sm:$0xff]
  %v52 = vld [vmem:[%s5 + $0x30] sm:$0xff]
  %v53 = vld [vmem:[%s5 + $0x38] sm:$0xff]
  %v54 = vld [vmem:[%s6] sm:$0x1]
  %v55 = vld [vmem:[%s7] sm:$0x1]
  %v56 = vld [vmem:[%s8] sm:$0xff]
  %v57 = vld [vmem:[%s8 + $0x8] sm:$0xff]
  %v58 = vld [vmem:[%s8 + $0x10] sm:$0xff]
  %v59 = vld [vmem:[%s8 + $0x18] sm:$0xff]
  %v60 = vld [vmem:[%s9] sm:$0x1]
  %v62 = vperm.slane %v55, 0
  %v65 = vperm.slane %v60, 0
  %v68 = vperm.slane %v54, 0
  %v70 = vld [vmem:[%s0] sm:$0xff]
  %v71 = vld [vmem:[%s0 + $0x8] sm:$0xff]
  %v72 = vld [vmem:[%s0 + $0x10] sm:$0xff]
  %v73 = vld [vmem:[%s0 + $0x18] sm:$0xff]
  %v74 = vld [vmem:[%s0 + $0x20] sm:$0xff]
  %v75 = vld [vmem:[%s0 + $0x28] sm:$0xff]
  %v76 = vld [vmem:[%s0 + $0x30] sm:$0xff]
  %v77 = vld [vmem:[%s0 + $0x38] sm:$0xff]
  %v79 = vperm.slane %v41, 0
  %vm81 = vcmask 130048
  %v83 = vsel %vm81, %v70, 0
  %v86 = vsel %vm81, %v71, 0
  %v89 = vsel %vm81, %v72, 0
  %v92 = vsel %vm81, %v73, 0
  %v95 = vsel %vm81, %v74, 0
  %v98 = vsel %vm81, %v75, 0
  %v101 = vsel %vm81, %v76, 0
  %v104 = vsel %vm81, %v77, 0
  %106 = vmatpush.msra.mxu0 0.0
  %107 = vmatpush.msra.mxu0 0.0
  %108 = vmatpush.msra.mxu0 0.0
  %109 = vmatpush.msra.mxu0 0.0
  %110 = vmatpush.msra.mxu0 0.0
  %111 = vmatpush.msra.mxu0 0.0
  %112 = vmatpush.msra.mxu0 0.0
  %113 = vmatpush.msra.mxu0 0.0
  %114 = vmatpush.msra.mxu0 0.0
  %115 = vmatpush.msra.mxu0 0.0
  %116 = vmatpush.msra.mxu0 0.0
  %117 = vmatpush.msra.mxu0 0.0
  %118 = vmatpush.msra.mxu0 0.0
  %119 = vmatpush.msra.mxu0 0.0
  %120 = vmatpush.msra.mxu0 %v36
  %121 = vmatpush.msra.mxu0 %v35
  %122 = vmatmul.f32.gmra.mxu0 %v83
  %v123 = vpop.f32.mrf.mxu0
  %v124 = vadd.f32 %v79, %v123
  %125 = vmatmul.f32.gmra.mxu0 %v86
  %v126 = vpop.f32.mrf.mxu0
  %v127 = vadd.f32 %v79, %v126
  %128 = vmatmul.f32.gmra.mxu0 %v89
  %v129 = vpop.f32.mrf.mxu0
  %v130 = vadd.f32 %v79, %v129
  %131 = vmatmul.f32.gmra.mxu0 %v92
  %v132 = vpop.f32.mrf.mxu0
  %v133 = vadd.f32 %v79, %v132
  %134 = vmatmul.f32.gmra.mxu0 %v95
  %v135 = vpop.f32.mrf.mxu0
  %v136 = vadd.f32 %v79, %v135
  %137 = vmatmul.f32.gmra.mxu0 %v98
  %v138 = vpop.f32.mrf.mxu0
  %v139 = vadd.f32 %v79, %v138
  %140 = vmatmul.f32.gmra.mxu0 %v101
  %v141 = vpop.f32.mrf.mxu0
  %v142 = vadd.f32 %v79, %v141
  %143 = vmatmul.f32.gmra.mxu0 %v104
  %v144 = vpop.f32.mrf.mxu0
  %v145 = vadd.f32 %v79, %v144
  %146 = vdwg.mxu0
  %vm147 = vcmask 261120
  %v149 = vsel %vm147, 0.1, 0
  %151 = vmatpush.msra.mxu0 0.0
  %152 = vmatpush.msra.mxu0 0.0
  %153 = vmatpush.msra.mxu0 0.0
  %154 = vmatpush.msra.mxu0 0.0
  %155 = vmatpush.msra.mxu0 0.0
  %156 = vmatpush.msra.mxu0 0.0
  %157 = vmatpush.msra.mxu0 0.0
  %158 = vmatpush.msra.mxu0 0.0
  %159 = vmatpush.msra.mxu0 0.0
  %160 = vmatpush.msra.mxu0 0.0
  %161 = vmatpush.msra.mxu0 0.0
  %162 = vmatpush.msra.mxu0 0.0
  %163 = vmatpush.msra.mxu0 %v40
  %164 = vmatpush.msra.mxu0 %v39
  %165 = vmatpush.msra.mxu0 %v38
  %166 = vmatpush.msra.mxu0 %v37
  %167 = vmatmul.f32.gmra.mxu0 %v149
  %v168 = vpop.f32.mrf.mxu0
  %v169 = vadd.f32 0.0, %v168
  %170 = vdwg.mxu0
  %v171 = vadd.f32 %v124, %v169
  %v172 = vxor.u32 %v171, 2147483648
  %v173 = vmul.f32 %v172, 1.442695
  %v174 = vpow.pop %v173
  %v175 = vadd.f32 %v174, 1.0
  %v176 = vrcp.pop %v175
  %v177 = vmul.f32 %v175, %v176
  %v178 = vsub.f32 1.0, %v177
  %v179 = vmul.f32 %v176, %v178
  %v180 = vadd.f32 %v176, %v179
  %vm181 = vweird.f32 %v175
  %vm182 = vweird.f32 %v176
  %vm183 = vmor %vm181, %vm182
  %v184 = vsel %vm183, %v176, %v180
  %v185 = vand.u32 2147483647, %v175
  %vm186 = vcmp.eq.f32.partialorder %v185, 8.507059e+37
  %v187 = vand.u32 %v175, 2147483648
  %v188 = vor.u32 1.1754944e-38, %v187
  %v189 = vsel %vm186, %v188, %v184
  %v190 = vmul.f32 1.0, %v189
  %v191 = vtanh.pop %v171
  %v192 = vmul.f32 %v190, 0.1
  %194 = vrot.lane.b32.xlu0 %v191, 64
  %v195 = vpop.permute.xlu0 %194
  %v197 = vmul.f32 %v190, %v195
  %199 = vrot.lane.b32.xlu0 %v197, 32
  %v200 = vpop.permute.xlu0 %199
  %v202 = vadd.f32 %v192, %v200
  %v203 = vtanh.pop %v202
  %205 = vrot.lane.b32.xlu0 %v203, 64
  %v206 = vpop.permute.xlu0 %205
  %v208 = vmul.f32 %v190, %v206
  %210 = vrot.lane.b32.xlu0 %v208, 32
  %v211 = vpop.permute.xlu0 %210
  %v212 = vsel %vm147, %v211, 0
  %214 = vmatpush.msra.mxu0 0.0
  %215 = vmatpush.msra.mxu0 0.0
  %216 = vmatpush.msra.mxu0 0.0
  %217 = vmatpush.msra.mxu0 0.0
  %218 = vmatpush.msra.mxu0 0.0
  %219 = vmatpush.msra.mxu0 0.0
  %220 = vmatpush.msra.mxu0 0.0
  %221 = vmatpush.msra.mxu0 0.0
  %222 = vmatpush.msra.mxu0 0.0
  %223 = vmatpush.msra.mxu0 0.0
  %224 = vmatpush.msra.mxu0 0.0
  %225 = vmatpush.msra.mxu0 0.0
  %226 = vmatpush.msra.mxu0 %v40
  %227 = vmatpush.msra.mxu0 %v39
  %228 = vmatpush.msra.mxu0 %v38
  %229 = vmatpush.msra.mxu0 %v37
  %230 = vmatmul.f32.gmra.mxu0 %v212
  %v231 = vpop.f32.mrf.mxu0
  %v232 = vadd.f32 0.0, %v231
  %233 = vdwg.mxu0
  %v234 = vadd.f32 %v127, %v232
  %v235 = vxor.u32 %v234, 2147483648
  %v236 = vmul.f32 %v235, 1.442695
  %v237 = vpow.pop %v236
  %v238 = vadd.f32 %v237, 1.0
  %v239 = vrcp.pop %v238
  %v240 = vmul.f32 %v238, %v239
  %v241 = vsub.f32 1.0, %v240
  %v242 = vmul.f32 %v239, %v241
  %v243 = vadd.f32 %v239, %v242
  %vm244 = vweird.f32 %v238
  %vm245 = vweird.f32 %v239
  %vm246 = vmor %vm244, %vm245
  %v247 = vsel %vm246, %v239, %v243
  %v248 = vand.u32 2147483647, %v238
  %vm249 = vcmp.eq.f32.partialorder %v248, 8.507059e+37
  %v250 = vand.u32 %v238, 2147483648
  %v251 = vor.u32 1.1754944e-38, %v250
  %v252 = vsel %vm249, %v251, %v247
  %v253 = vmul.f32 1.0, %v252
  %v254 = vtanh.pop %v234
  %v255 = vmul.f32 %v253, %v202
  %257 = vrot.lane.b32.xlu0 %v254, 64
  %v258 = vpop.permute.xlu0 %257
  %v260 = vmul.f32 %v253, %v258
  %262 = vrot.lane.b32.xlu0 %v260, 32
  %v263 = vpop.permute.xlu0 %262
  %v265 = vadd.f32 %v255, %v263
  %v266 = vtanh.pop %v265
  %268 = vrot.lane.b32.xlu0 %v266, 64
  %v269 = vpop.permute.xlu0 %268
  %v271 = vmul.f32 %v253, %v269
  %273 = vrot.lane.b32.xlu0 %v271, 32
  %v274 = vpop.permute.xlu0 %273
  %v275 = vsel %vm147, %v274, 0
  %277 = vmatpush.msra.mxu0 0.0
  %278 = vmatpush.msra.mxu0 0.0
  %279 = vmatpush.msra.mxu0 0.0
  %280 = vmatpush.msra.mxu0 0.0
  %281 = vmatpush.msra.mxu0 0.0
  %282 = vmatpush.msra.mxu0 0.0
  %283 = vmatpush.msra.mxu0 0.0
  %284 = vmatpush.msra.mxu0 0.0
  %285 = vmatpush.msra.mxu0 0.0
  %286 = vmatpush.msra.mxu0 0.0
  %287 = vmatpush.msra.mxu0 0.0
  %288 = vmatpush.msra.mxu0 0.0
  %289 = vmatpush.msra.mxu0 %v40
  %290 = vmatpush.msra.mxu0 %v39
  %291 = vmatpush.msra.mxu0 %v38
  %292 = vmatpush.msra.mxu0 %v37
  %293 = vmatmul.f32.gmra.mxu0 %v275
  %v294 = vpop.f32.mrf.mxu0
  %v295 = vadd.f32 0.0, %v294
  %296 = vdwg.mxu0
  %v297 = vadd.f32 %v130, %v295
  %v298 = vxor.u32 %v297, 2147483648
  %v299 = vmul.f32 %v298, 1.442695
  %v300 = vpow.pop %v299
  %v301 = vadd.f32 %v300, 1.0
  %v302 = vrcp.pop %v301
  %v303 = vmul.f32 %v301, %v302
  %v304 = vsub.f32 1.0, %v303
  %v305 = vmul.f32 %v302, %v304
  %v306 = vadd.f32 %v302, %v305
  %vm307 = vweird.f32 %v301
  %vm308 = vweird.f32 %v302
  %vm309 = vmor %vm307, %vm308
  %v310 = vsel %vm309, %v302, %v306
  %v311 = vand.u32 2147483647, %v301
  %vm312 = vcmp.eq.f32.partialorder %v311, 8.507059e+37
  %v313 = vand.u32 %v301, 2147483648
  %v314 = vor.u32 1.1754944e-38, %v313
  %v315 = vsel %vm312, %v314, %v310
  %v316 = vmul.f32 1.0, %v315
  %v317 = vtanh.pop %v297
  %v318 = vmul.f32 %v316, %v265
  %320 = vrot.lane.b32.xlu0 %v317, 64
  %v321 = vpop.permute.xlu0 %320
  %v323 = vmul.f32 %v316, %v321
  %325 = vrot.lane.b32.xlu0 %v323, 32
  %v326 = vpop.permute.xlu0 %325
  %v328 = vadd.f32 %v318, %v326
  %v329 = vtanh.pop %v328
  %331 = vrot.lane.b32.xlu0 %v329, 64
  %v332 = vpop.permute.xlu0 %331
  %v334 = vmul.f32 %v316, %v332
  %336 = vrot.lane.b32.xlu0 %v334, 32
  %v337 = vpop.permute.xlu0 %336
  %v338 = vsel %vm147, %v337, 0
  %340 = vmatpush.msra.mxu0 0.0
  %341 = vmatpush.msra.mxu0 0.0
  %342 = vmatpush.msra.mxu0 0.0
  %343 = vmatpush.msra.mxu0 0.0
  %344 = vmatpush.msra.mxu0 0.0
  %345 = vmatpush.msra.mxu0 0.0
  %346 = vmatpush.msra.mxu0 0.0
  %347 = vmatpush.msra.mxu0 0.0
  %348 = vmatpush.msra.mxu0 0.0
  %349 = vmatpush.msra.mxu0 0.0
  %350 = vmatpush.msra.mxu0 0.0
  %351 = vmatpush.msra.mxu0 0.0
  %352 = vmatpush.msra.mxu0 %v40
  %353 = vmatpush.msra.mxu0 %v39
  %354 = vmatpush.msra.mxu0 %v38
  %355 = vmatpush.msra.mxu0 %v37
  %356 = vmatmul.f32.gmra.mxu0 %v338
  %v357 = vpop.f32.mrf.mxu0
  %v358 = vadd.f32 0.0, %v357
  %359 = vdwg.mxu0
  %v360 = vadd.f32 %v133, %v358
  %v361 = vxor.u32 %v360, 2147483648
  %v362 = vmul.f32 %v361, 1.442695
  %v363 = vpow.pop %v362
  %v364 = vadd.f32 %v363, 1.0
  %v365 = vrcp.pop %v364
  %v366 = vmul.f32 %v364, %v365
  %v367 = vsub.f32 1.0, %v366
  %v368 = vmul.f32 %v365, %v367
  %v369 = vadd.f32 %v365, %v368
  %vm370 = vweird.f32 %v364
  %vm371 = vweird.f32 %v365
  %vm372 = vmor %vm370, %vm371
  %v373 = vsel %vm372, %v365, %v369
  %v374 = vand.u32 2147483647, %v364
  %vm375 = vcmp.eq.f32.partialorder %v374, 8.507059e+37
  %v376 = vand.u32 %v364, 2147483648
  %v377 = vor.u32 1.1754944e-38, %v376
  %v378 = vsel %vm375, %v377, %v373
  %v379 = vmul.f32 1.0, %v378
  %v380 = vtanh.pop %v360
  %v381 = vmul.f32 %v379, %v328
  %383 = vrot.lane.b32.xlu0 %v380, 64
  %v384 = vpop.permute.xlu0 %383
  %v386 = vmul.f32 %v379, %v384
  %388 = vrot.lane.b32.xlu0 %v386, 32
  %v389 = vpop.permute.xlu0 %388
  %v391 = vadd.f32 %v381, %v389
  %v392 = vtanh.pop %v391
  %394 = vrot.lane.b32.xlu0 %v392, 64
  %v395 = vpop.permute.xlu0 %394
  %v397 = vmul.f32 %v379, %v395
  %399 = vrot.lane.b32.xlu0 %v397, 32
  %v400 = vpop.permute.xlu0 %399
  %v401 = vsel %vm147, %v400, 0
  %403 = vmatpush.msra.mxu0 0.0
  %404 = vmatpush.msra.mxu0 0.0
  %405 = vmatpush.msra.mxu0 0.0
  %406 = vmatpush.msra.mxu0 0.0
  %407 = vmatpush.msra.mxu0 0.0
  %408 = vmatpush.msra.mxu0 0.0
  %409 = vmatpush.msra.mxu0 0.0
  %410 = vmatpush.msra.mxu0 0.0
  %411 = vmatpush.msra.mxu0 0.0
  %412 = vmatpush.msra.mxu0 0.0
  %413 = vmatpush.msra.mxu0 0.0
  %414 = vmatpush.msra.mxu0 0.0
  %415 = vmatpush.msra.mxu0 %v40
  %416 = vmatpush.msra.mxu0 %v39
  %417 = vmatpush.msra.mxu0 %v38
  %418 = vmatpush.msra.mxu0 %v37
  %419 = vmatmul.f32.gmra.mxu0 %v401
  %v420 = vpop.f32.mrf.mxu0
  %v421 = vadd.f32 0.0, %v420
  %422 = vdwg.mxu0
  %v423 = vadd.f32 %v136, %v421
  %v424 = vxor.u32 %v423, 2147483648
  %v425 = vmul.f32 %v424, 1.442695
  %v426 = vpow.pop %v425
  %v427 = vadd.f32 %v426, 1.0
  %v428 = vrcp.pop %v427
  %v429 = vmul.f32 %v427, %v428
  %v430 = vsub.f32 1.0, %v429
  %v431 = vmul.f32 %v428, %v430
  %v432 = vadd.f32 %v428, %v431
  %vm433 = vweird.f32 %v427
  %vm434 = vweird.f32 %v428
  %vm435 = vmor %vm433, %vm434
  %v436 = vsel %vm435, %v428, %v432
  %v437 = vand.u32 2147483647, %v427
  %vm438 = vcmp.eq.f32.partialorder %v437, 8.507059e+37
  %v439 = vand.u32 %v427, 2147483648
  %v440 = vor.u32 1.1754944e-38, %v439
  %v441 = vsel %vm438, %v440, %v436
  %v442 = vmul.f32 1.0, %v441
  %v443 = vtanh.pop %v423
  %v444 = vmul.f32 %v442, %v391
  %446 = vrot.lane.b32.xlu0 %v443, 64
  %v447 = vpop.permute.xlu0 %446
  %v449 = vmul.f32 %v442, %v447
  %451 = vrot.lane.b32.xlu0 %v449, 32
  %v452 = vpop.permute.xlu0 %451
  %v454 = vadd.f32 %v444, %v452
  %v455 = vtanh.pop %v454
  %457 = vrot.lane.b32.xlu0 %v455, 64
  %v458 = vpop.permute.xlu0 %457
  %v460 = vmul.f32 %v442, %v458
  %462 = vrot.lane.b32.xlu0 %v460, 32
  %v463 = vpop.permute.xlu0 %462
  %v464 = vsel %vm147, %v463, 0
  %466 = vmatpush.msra.mxu0 0.0
  %467 = vmatpush.msra.mxu0 0.0
  %468 = vmatpush.msra.mxu0 0.0
  %469 = vmatpush.msra.mxu0 0.0
  %470 = vmatpush.msra.mxu0 0.0
  %471 = vmatpush.msra.mxu0 0.0
  %472 = vmatpush.msra.mxu0 0.0
  %473 = vmatpush.msra.mxu0 0.0
  %474 = vmatpush.msra.mxu0 0.0
  %475 = vmatpush.msra.mxu0 0.0
  %476 = vmatpush.msra.mxu0 0.0
  %477 = vmatpush.msra.mxu0 0.0
  %478 = vmatpush.msra.mxu0 %v40
  %479 = vmatpush.msra.mxu0 %v39
  %480 = vmatpush.msra.mxu0 %v38
  %481 = vmatpush.msra.mxu0 %v37
  %482 = vmatmul.f32.gmra.mxu0 %v464
  %v483 = vpop.f32.mrf.mxu0
  %v484 = vadd.f32 0.0, %v483
  %485 = vdwg.mxu0
  %v486 = vadd.f32 %v139, %v484
  %v487 = vxor.u32 %v486, 2147483648
  %v488 = vmul.f32 %v487, 1.442695
  %v489 = vpow.pop %v488
  %v490 = vadd.f32 %v489, 1.0
  %v491 = vrcp.pop %v490
  %v492 = vmul.f32 %v490, %v491
  %v493 = vsub.f32 1.0, %v492
  %v494 = vmul.f32 %v491, %v493
  %v495 = vadd.f32 %v491, %v494
  %vm496 = vweird.f32 %v490
  %vm497 = vweird.f32 %v491
  %vm498 = vmor %vm496, %vm497
  %v499 = vsel %vm498, %v491, %v495
  %v500 = vand.u32 2147483647, %v490
  %vm501 = vcmp.eq.f32.partialorder %v500, 8.507059e+37
  %v502 = vand.u32 %v490, 2147483648
  %v503 = vor.u32 1.1754944e-38, %v502
  %v504 = vsel %vm501, %v503, %v499
  %v505 = vmul.f32 1.0, %v504
  %v506 = vtanh.pop %v486
  %v507 = vmul.f32 %v505, %v454
  %509 = vrot.lane.b32.xlu0 %v506, 64
  %v510 = vpop.permute.xlu0 %509
  %v512 = vmul.f32 %v505, %v510
  %514 = vrot.lane.b32.xlu0 %v512, 32
  %v515 = vpop.permute.xlu0 %514
  %v517 = vadd.f32 %v507, %v515
  %v518 = vtanh.pop %v517
  %520 = vrot.lane.b32.xlu0 %v518, 64
  %v521 = vpop.permute.xlu0 %520
  %v523 = vmul.f32 %v505, %v521
  %525 = vrot.lane.b32.xlu0 %v523, 32
  %v526 = vpop.permute.xlu0 %525
  %v527 = vsel %vm147, %v526, 0
  %529 = vmatpush.msra.mxu0 0.0
  %530 = vmatpush.msra.mxu0 0.0
  %531 = vmatpush.msra.mxu0 0.0
  %532 = vmatpush.msra.mxu0 0.0
  %533 = vmatpush.msra.mxu0 0.0
  %534 = vmatpush.msra.mxu0 0.0
  %535 = vmatpush.msra.mxu0 0.0
  %536 = vmatpush.msra.mxu0 0.0
  %537 = vmatpush.msra.mxu0 0.0
  %538 = vmatpush.msra.mxu0 0.0
  %539 = vmatpush.msra.mxu0 0.0
  %540 = vmatpush.msra.mxu0 0.0
  %541 = vmatpush.msra.mxu0 %v40
  %542 = vmatpush.msra.mxu0 %v39
  %543 = vmatpush.msra.mxu0 %v38
  %544 = vmatpush.msra.mxu0 %v37
  %545 = vmatmul.f32.gmra.mxu0 %v527
  %v546 = vpop.f32.mrf.mxu0
  %v547 = vadd.f32 0.0, %v546
  %548 = vdwg.mxu0
  %v549 = vadd.f32 %v142, %v547
  %v550 = vxor.u32 %v549, 2147483648
  %v551 = vmul.f32 %v550, 1.442695
  %v552 = vpow.pop %v551
  %v553 = vadd.f32 %v552, 1.0
  %v554 = vrcp.pop %v553
  %v555 = vmul.f32 %v553, %v554
  %v556 = vsub.f32 1.0, %v555
  %v557 = vmul.f32 %v554, %v556
  %v558 = vadd.f32 %v554, %v557
  %vm559 = vweird.f32 %v553
  %vm560 = vweird.f32 %v554
  %vm561 = vmor %vm559, %vm560
  %v562 = vsel %vm561, %v554, %v558
  %v563 = vand.u32 2147483647, %v553
  %vm564 = vcmp.eq.f32.partialorder %v563, 8.507059e+37
  %v565 = vand.u32 %v553, 2147483648
  %v566 = vor.u32 1.1754944e-38, %v565
  %v567 = vsel %vm564, %v566, %v562
  %v568 = vmul.f32 1.0, %v567
  %v569 = vtanh.pop %v549
  %v570 = vmul.f32 %v568, %v517
  %572 = vrot.lane.b32.xlu0 %v569, 64
  %v573 = vpop.permute.xlu0 %572
  %v575 = vmul.f32 %v568, %v573
  %577 = vrot.lane.b32.xlu0 %v575, 32
  %v578 = vpop.permute.xlu0 %577
  %v580 = vadd.f32 %v570, %v578
  %v581 = vtanh.pop %v580
  %583 = vrot.lane.b32.xlu0 %v581, 64
  %v584 = vpop.permute.xlu0 %583
  %v586 = vmul.f32 %v568, %v584
  %588 = vrot.lane.b32.xlu0 %v586, 32
  %v589 = vpop.permute.xlu0 %588
  %v590 = vsel %vm147, %v589, 0
  %592 = vmatpush.msra.mxu0 0.0
  %593 = vmatpush.msra.mxu0 0.0
  %594 = vmatpush.msra.mxu0 0.0
  %595 = vmatpush.msra.mxu0 0.0
  %596 = vmatpush.msra.mxu0 0.0
  %597 = vmatpush.msra.mxu0 0.0
  %598 = vmatpush.msra.mxu0 0.0
  %599 = vmatpush.msra.mxu0 0.0
  %600 = vmatpush.msra.mxu0 0.0
  %601 = vmatpush.msra.mxu0 0.0
  %602 = vmatpush.msra.mxu0 0.0
  %603 = vmatpush.msra.mxu0 0.0
  %604 = vmatpush.msra.mxu0 %v40
  %605 = vmatpush.msra.mxu0 %v39
  %606 = vmatpush.msra.mxu0 %v38
  %607 = vmatpush.msra.mxu0 %v37
  %608 = vmatmul.f32.gmra.mxu0 %v590
  %v609 = vpop.f32.mrf.mxu0
  %v610 = vadd.f32 0.0, %v609
  %611 = vdwg.mxu0
  %v612 = vadd.f32 %v145, %v610
  %v613 = vxor.u32 %v612, 2147483648
  %v614 = vmul.f32 %v613, 1.442695
  %v615 = vpow.pop %v614
  %v616 = vadd.f32 %v615, 1.0
  %v617 = vrcp.pop %v616
  %v618 = vmul.f32 %v616, %v617
  %v619 = vsub.f32 1.0, %v618
  %v620 = vmul.f32 %v617, %v619
  %v621 = vadd.f32 %v617, %v620
  %vm622 = vweird.f32 %v616
  %vm623 = vweird.f32 %v617
  %vm624 = vmor %vm622, %vm623
  %v625 = vsel %vm624, %v617, %v621
  %v626 = vand.u32 2147483647, %v616
  %vm627 = vcmp.eq.f32.partialorder %v626, 8.507059e+37
  %v628 = vand.u32 %v616, 2147483648
  %v629 = vor.u32 1.1754944e-38, %v628
  %v630 = vsel %vm627, %v629, %v625
  %v631 = vmul.f32 1.0, %v630
  %v632 = vtanh.pop %v612
  %v633 = vmul.f32 %v631, %v580
  %635 = vrot.lane.b32.xlu0 %v632, 64
  %v636 = vpop.permute.xlu0 %635
  %v638 = vmul.f32 %v631, %v636
  %640 = vrot.lane.b32.xlu0 %v638, 32
  %v641 = vpop.permute.xlu0 %640
  %v643 = vadd.f32 %v633, %v641
  %v644 = vtanh.pop %v643
  %646 = vrot.lane.b32.xlu0 %v644, 96
  %v647 = vpop.permute.xlu0 %646
  %v648 = vsel %vm147, %v647, 0
  %650 = vmatpush.msra.mxu0 0.0
  %651 = vmatpush.msra.mxu0 0.0
  %652 = vmatpush.msra.mxu0 0.0
  %653 = vmatpush.msra.mxu0 0.0
  %654 = vmatpush.msra.mxu0 0.0
  %655 = vmatpush.msra.mxu0 0.0
  %656 = vmatpush.msra.mxu0 0.0
  %657 = vmatpush.msra.mxu0 0.0
  %658 = vmatpush.msra.mxu0 0.0
  %659 = vmatpush.msra.mxu0 0.0
  %660 = vmatpush.msra.mxu0 0.0
  %661 = vmatpush.msra.mxu0 0.0
  %662 = vmatpush.msra.mxu0 %v45
  %663 = vmatpush.msra.mxu0 %v44
  %664 = vmatpush.msra.mxu0 %v43
  %665 = vmatpush.msra.mxu0 %v42
  %666 = vmatmul.f32.gmra.mxu0 %v648
  %v667 = vpop.f32.mrf.mxu0
  %v668 = vadd.f32 %v68, %v667
  %669 = vdwg.mxu0
  %v670 = vxor.u32 %v668, 2147483648
  %v671 = vmul.f32 %v670, 1.442695
  %v672 = vpow.pop %v671
  %v673 = vadd.f32 %v672, 1.0
  %v674 = vrcp.pop %v673
  %v675 = vmul.f32 %v673, %v674
  %v676 = vsub.f32 1.0, %v675
  %v677 = vmul.f32 %v674, %v676
  %v678 = vadd.f32 %v674, %v677
  %vm679 = vweird.f32 %v673
  %vm680 = vweird.f32 %v674
  %vm681 = vmor %vm679, %vm680
  %v682 = vsel %vm681, %v674, %v678
  %v683 = vand.u32 2147483647, %v673
  %vm684 = vcmp.eq.f32.partialorder %v683, 8.507059e+37
  %v685 = vand.u32 %v673, 2147483648
  %v686 = vor.u32 1.1754944e-38, %v685
  %v687 = vsel %vm684, %v686, %v682
  %v688 = vmul.f32 1.0, %v687
  %v689 = vtanh.pop %v668
  %v690 = vmul.f32 %v688, %v643
  %692 = vrot.lane.b32.xlu0 %v689, 64
  %v693 = vpop.permute.xlu0 %692
  %v695 = vmul.f32 %v688, %v693
  %697 = vrot.lane.b32.xlu0 %v695, 32
  %v698 = vpop.permute.xlu0 %697
  %v700 = vadd.f32 %v690, %v698
  %v701 = vtanh.pop %v700
  %703 = vrot.lane.b32.xlu0 %v701, 64
  %v704 = vpop.permute.xlu0 %703
  %v706 = vmul.f32 %v688, %v704
  %708 = vrot.lane.b32.xlu0 %v706, 32
  %v709 = vpop.permute.xlu0 %708
  %v710 = vsel %vm147, %v709, 0
  %712 = vmatpush.msra.mxu0 0.0
  %713 = vmatpush.msra.mxu0 0.0
  %714 = vmatpush.msra.mxu0 0.0
  %715 = vmatpush.msra.mxu0 0.0
  %716 = vmatpush.msra.mxu0 0.0
  %717 = vmatpush.msra.mxu0 0.0
  %718 = vmatpush.msra.mxu0 0.0
  %719 = vmatpush.msra.mxu0 0.0
  %720 = vmatpush.msra.mxu0 0.0
  %721 = vmatpush.msra.mxu0 0.0
  %722 = vmatpush.msra.mxu0 0.0
  %723 = vmatpush.msra.mxu0 0.0
  %724 = vmatpush.msra.mxu0 %v52
  %725 = vmatpush.msra.mxu0 %v50
  %726 = vmatpush.msra.mxu0 %v48
  %727 = vmatpush.msra.mxu0 %v46
  %728 = vmatmul.f32.gmra.mxu0 %v710
  %v729 = vpop.f32.mrf.mxu0
  %v730 = vadd.f32 0.0, %v729
  %731 = vdwg.mxu0
  %732 = vmatpush.msra.mxu0 0.0
  %733 = vmatpush.msra.mxu0 0.0
  %734 = vmatpush.msra.mxu0 0.0
  %735 = vmatpush.msra.mxu0 0.0
  %736 = vmatpush.msra.mxu0 0.0
  %737 = vmatpush.msra.mxu0 0.0
  %738 = vmatpush.msra.mxu0 0.0
  %739 = vmatpush.msra.mxu0 0.0
  %740 = vmatpush.msra.mxu0 0.0
  %741 = vmatpush.msra.mxu0 0.0
  %742 = vmatpush.msra.mxu0 0.0
  %743 = vmatpush.msra.mxu0 0.0
  %744 = vmatpush.msra.mxu0 %v53
  %745 = vmatpush.msra.mxu0 %v51
  %746 = vmatpush.msra.mxu0 %v49
  %747 = vmatpush.msra.mxu0 %v47
  %748 = vmatmul.f32.gmra.mxu0 %v710
  %v749 = vpop.f32.mrf.mxu0
  %v750 = vadd.f32 0.0, %v749
  %751 = vdwg.mxu0
  %v752 = vadd.f32 %v750, %v65
  %v753 = vtanh.pop %v752
  %v754 = vadd.f32 %v730, %v62
  %v755 = vxor.u32 %v754, 2147483648
  %v756 = vmul.f32 %v755, 1.442695
  %v757 = vpow.pop %v756
  %v758 = vadd.f32 %v757, 1.0
  %v759 = vrcp.pop %v758
  %v760 = vmul.f32 %v758, %v759
  %v761 = vsub.f32 1.0, %v760
  %v762 = vmul.f32 %v759, %v761
  %v763 = vadd.f32 %v759, %v762
  %vm764 = vweird.f32 %v758
  %vm765 = vweird.f32 %v759
  %vm766 = vmor %vm764, %vm765
  %v767 = vsel %vm766, %v759, %v763
  %v768 = vand.u32 2147483647, %v758
  %vm769 = vcmp.eq.f32.partialorder %v768, 8.507059e+37
  %v770 = vand.u32 %v758, 2147483648
  %v771 = vor.u32 1.1754944e-38, %v770
  %v772 = vsel %vm769, %v771, %v767
  %v773 = vmul.f32 1.0, %v772
  %v774 = vtanh.pop %v754
  %v775 = vmul.f32 %v773, %v700
  %777 = vrot.lane.b32.xlu0 %v774, 64
  %v778 = vpop.permute.xlu0 %777
  %v780 = vmul.f32 %v773, %v778
  %782 = vrot.lane.b32.xlu0 %v780, 32
  %v783 = vpop.permute.xlu0 %782
  %v785 = vadd.f32 %v775, %v783
  %v786 = vtanh.pop %v785
  %788 = vrot.lane.b32.xlu0 %v786, 64
  %v789 = vpop.permute.xlu0 %788
  %v791 = vmul.f32 %v773, %v789
  %793 = vrot.lane.b32.xlu0 %v791, 32
  %v794 = vpop.permute.xlu0 %793
  %v795 = vsel %vm147, %v794, 0
  %797 = vmatpush.msra.mxu0 0.0
  %798 = vmatpush.msra.mxu0 0.0
  %799 = vmatpush.msra.mxu0 0.0
  %800 = vmatpush.msra.mxu0 0.0
  %801 = vmatpush.msra.mxu0 0.0
  %802 = vmatpush.msra.mxu0 0.0
  %803 = vmatpush.msra.mxu0 0.0
  %804 = vmatpush.msra.mxu0 0.0
  %805 = vmatpush.msra.mxu0 0.0
  %806 = vmatpush.msra.mxu0 0.0
  %807 = vmatpush.msra.mxu0 0.0
  %808 = vmatpush.msra.mxu0 0.0
  %809 = vmatpush.msra.mxu0 %v52
  %810 = vmatpush.msra.mxu0 %v50
  %811 = vmatpush.msra.mxu0 %v48
  %812 = vmatpush.msra.mxu0 %v46
  %813 = vmatmul.f32.gmra.mxu0 %v795
  %v814 = vpop.f32.mrf.mxu0
  %v815 = vadd.f32 0.0, %v814
  %816 = vdwg.mxu0
  %817 = vmatpush.msra.mxu0 0.0
  %818 = vmatpush.msra.mxu0 0.0
  %819 = vmatpush.msra.mxu0 0.0
  %820 = vmatpush.msra.mxu0 0.0
  %821 = vmatpush.msra.mxu0 0.0
  %822 = vmatpush.msra.mxu0 0.0
  %823 = vmatpush.msra.mxu0 0.0
  %824 = vmatpush.msra.mxu0 0.0
  %825 = vmatpush.msra.mxu0 0.0
  %826 = vmatpush.msra.mxu0 0.0
  %827 = vmatpush.msra.mxu0 0.0
  %828 = vmatpush.msra.mxu0 0.0
  %829 = vmatpush.msra.mxu0 %v53
  %830 = vmatpush.msra.mxu0 %v51
  %831 = vmatpush.msra.mxu0 %v49
  %832 = vmatpush.msra.mxu0 %v47
  %833 = vmatmul.f32.gmra.mxu0 %v795
  %v834 = vpop.f32.mrf.mxu0
  %v835 = vadd.f32 0.0, %v834
  %836 = vdwg.mxu0
  %v837 = vadd.f32 %v835, %v65
  %v838 = vtanh.pop %v837
  %v839 = vadd.f32 %v815, %v62
  %v840 = vxor.u32 %v839, 2147483648
  %v841 = vmul.f32 %v840, 1.442695
  %v842 = vpow.pop %v841
  %v843 = vadd.f32 %v842, 1.0
  %v844 = vrcp.pop %v843
  %v845 = vmul.f32 %v843, %v844
  %v846 = vsub.f32 1.0, %v845
  %v847 = vmul.f32 %v844, %v846
  %v848 = vadd.f32 %v844, %v847
  %vm849 = vweird.f32 %v843
  %vm850 = vweird.f32 %v844
  %vm851 = vmor %vm849, %vm850
  %v852 = vsel %vm851, %v844, %v848
  %v853 = vand.u32 2147483647, %v843
  %vm854 = vcmp.eq.f32.partialorder %v853, 8.507059e+37
  %v855 = vand.u32 %v843, 2147483648
  %v856 = vor.u32 1.1754944e-38, %v855
  %v857 = vsel %vm854, %v856, %v852
  %v858 = vmul.f32 1.0, %v857
  %v859 = vtanh.pop %v839
  %v860 = vmul.f32 %v858, %v785
  %862 = vrot.lane.b32.xlu0 %v859, 64
  %v863 = vpop.permute.xlu0 %862
  %v865 = vmul.f32 %v858, %v863
  %867 = vrot.lane.b32.xlu0 %v865, 32
  %v868 = vpop.permute.xlu0 %867
  %v870 = vadd.f32 %v860, %v868
  %v871 = vtanh.pop %v870
  %873 = vrot.lane.b32.xlu0 %v871, 64
  %v874 = vpop.permute.xlu0 %873
  %v876 = vmul.f32 %v858, %v874
  %878 = vrot.lane.b32.xlu0 %v876, 32
  %v879 = vpop.permute.xlu0 %878
  %v880 = vsel %vm147, %v879, 0
  %882 = vmatpush.msra.mxu0 0.0
  %883 = vmatpush.msra.mxu0 0.0
  %884 = vmatpush.msra.mxu0 0.0
  %885 = vmatpush.msra.mxu0 0.0
  %886 = vmatpush.msra.mxu0 0.0
  %887 = vmatpush.msra.mxu0 0.0
  %888 = vmatpush.msra.mxu0 0.0
  %889 = vmatpush.msra.mxu0 0.0
  %890 = vmatpush.msra.mxu0 0.0
  %891 = vmatpush.msra.mxu0 0.0
  %892 = vmatpush.msra.mxu0 0.0
  %893 = vmatpush.msra.mxu0 0.0
  %894 = vmatpush.msra.mxu0 %v52
  %895 = vmatpush.msra.mxu0 %v50
  %896 = vmatpush.msra.mxu0 %v48
  %897 = vmatpush.msra.mxu0 %v46
  %898 = vmatmul.f32.gmra.mxu0 %v880
  %v899 = vpop.f32.mrf.mxu0
  %v900 = vadd.f32 0.0, %v899
  %901 = vdwg.mxu0
  %902 = vmatpush.msra.mxu0 0.0
  %903 = vmatpush.msra.mxu0 0.0
  %904 = vmatpush.msra.mxu0 0.0
  %905 = vmatpush.msra.mxu0 0.0
  %906 = vmatpush.msra.mxu0 0.0
  %907 = vmatpush.msra.mxu0 0.0
  %908 = vmatpush.msra.mxu0 0.0
  %909 = vmatpush.msra.mxu0 0.0
  %910 = vmatpush.msra.mxu0 0.0
  %911 = vmatpush.msra.mxu0 0.0
  %912 = vmatpush.msra.mxu0 0.0
  %913 = vmatpush.msra.mxu0 0.0
  %914 = vmatpush.msra.mxu0 %v53
  %915 = vmatpush.msra.mxu0 %v51
  %916 = vmatpush.msra.mxu0 %v49
  %917 = vmatpush.msra.mxu0 %v47
  %918 = vmatmul.f32.gmra.mxu0 %v880
  %v919 = vpop.f32.mrf.mxu0
  %v920 = vadd.f32 0.0, %v919
  %921 = vdwg.mxu0
  %v922 = vadd.f32 %v920, %v65
  %v923 = vtanh.pop %v922
  %v924 = vadd.f32 %v900, %v62
  %v925 = vxor.u32 %v924, 2147483648
  %v926 = vmul.f32 %v925, 1.442695
  %v927 = vpow.pop %v926
  %v928 = vadd.f32 %v927, 1.0
  %v929 = vrcp.pop %v928
  %v930 = vmul.f32 %v928, %v929
  %v931 = vsub.f32 1.0, %v930
  %v932 = vmul.f32 %v929, %v931
  %v933 = vadd.f32 %v929, %v932
  %vm934 = vweird.f32 %v928
  %vm935 = vweird.f32 %v929
  %vm936 = vmor %vm934, %vm935
  %v937 = vsel %vm936, %v929, %v933
  %v938 = vand.u32 2147483647, %v928
  %vm939 = vcmp.eq.f32.partialorder %v938, 8.507059e+37
  %v940 = vand.u32 %v928, 2147483648
  %v941 = vor.u32 1.1754944e-38, %v940
  %v942 = vsel %vm939, %v941, %v937
  %v943 = vmul.f32 1.0, %v942
  %v944 = vtanh.pop %v924
  %v945 = vmul.f32 %v943, %v870
  %947 = vrot.lane.b32.xlu0 %v944, 64
  %v948 = vpop.permute.xlu0 %947
  %v950 = vmul.f32 %v943, %v948
  %952 = vrot.lane.b32.xlu0 %v950, 32
  %v953 = vpop.permute.xlu0 %952
  %v955 = vadd.f32 %v945, %v953
  %v956 = vtanh.pop %v955
  %958 = vrot.lane.b32.xlu0 %v956, 64
  %v959 = vpop.permute.xlu0 %958
  %v961 = vmul.f32 %v943, %v959
  %963 = vrot.lane.b32.xlu0 %v961, 32
  %v964 = vpop.permute.xlu0 %963
  %v965 = vsel %vm147, %v964, 0
  %967 = vmatpush.msra.mxu0 0.0
  %968 = vmatpush.msra.mxu0 0.0
  %969 = vmatpush.msra.mxu0 0.0
  %970 = vmatpush.msra.mxu0 0.0
  %971 = vmatpush.msra.mxu0 0.0
  %972 = vmatpush.msra.mxu0 0.0
  %973 = vmatpush.msra.mxu0 0.0
  %974 = vmatpush.msra.mxu0 0.0
  %975 = vmatpush.msra.mxu0 0.0
  %976 = vmatpush.msra.mxu0 0.0
  %977 = vmatpush.msra.mxu0 0.0
  %978 = vmatpush.msra.mxu0 0.0
  %979 = vmatpush.msra.mxu0 %v52
  %980 = vmatpush.msra.mxu0 %v50
  %981 = vmatpush.msra.mxu0 %v48
  %982 = vmatpush.msra.mxu0 %v46
  %983 = vmatmul.f32.gmra.mxu0 %v965
  %v984 = vpop.f32.mrf.mxu0
  %v985 = vadd.f32 0.0, %v984
  %986 = vdwg.mxu0
  %987 = vmatpush.msra.mxu0 0.0
  %988 = vmatpush.msra.mxu0 0.0
  %989 = vmatpush.msra.mxu0 0.0
  %990 = vmatpush.msra.mxu0 0.0
  %991 = vmatpush.msra.mxu0 0.0
  %992 = vmatpush.msra.mxu0 0.0
  %993 = vmatpush.msra.mxu0 0.0
  %994 = vmatpush.msra.mxu0 0.0
  %995 = vmatpush.msra.mxu0 0.0
  %996 = vmatpush.msra.mxu0 0.0
  %997 = vmatpush.msra.mxu0 0.0
  %998 = vmatpush.msra.mxu0 0.0
  %999 = vmatpush.msra.mxu0 %v53
  %1000 = vmatpush.msra.mxu0 %v51
  %1001 = vmatpush.msra.mxu0 %v49
  %1002 = vmatpush.msra.mxu0 %v47
  %1003 = vmatmul.f32.gmra.mxu0 %v965
  %v1004 = vpop.f32.mrf.mxu0
  %v1005 = vadd.f32 0.0, %v1004
  %1006 = vdwg.mxu0
  %v1007 = vadd.f32 %v1005, %v65
  %v1008 = vtanh.pop %v1007
  %v1009 = vadd.f32 %v985, %v62
  %v1010 = vxor.u32 %v1009, 2147483648
  %v1011 = vmul.f32 %v1010, 1.442695
  %v1012 = vpow.pop %v1011
  %v1013 = vadd.f32 %v1012, 1.0
  %v1014 = vrcp.pop %v1013
  %v1015 = vmul.f32 %v1013, %v1014
  %v1016 = vsub.f32 1.0, %v1015
  %v1017 = vmul.f32 %v1014, %v1016
  %v1018 = vadd.f32 %v1014, %v1017
  %vm1019 = vweird.f32 %v1013
  %vm1020 = vweird.f32 %v1014
  %vm1021 = vmor %vm1019, %vm1020
  %v1022 = vsel %vm1021, %v1014, %v1018
  %v1023 = vand.u32 2147483647, %v1013
  %vm1024 = vcmp.eq.f32.partialorder %v1023, 8.507059e+37
  %v1025 = vand.u32 %v1013, 2147483648
  %v1026 = vor.u32 1.1754944e-38, %v1025
  %v1027 = vsel %vm1024, %v1026, %v1022
  %v1028 = vmul.f32 1.0, %v1027
  %v1029 = vtanh.pop %v1009
  %v1030 = vmul.f32 %v1028, %v955
  %1032 = vrot.lane.b32.xlu0 %v1029, 64
  %v1033 = vpop.permute.xlu0 %1032
  %v1035 = vmul.f32 %v1028, %v1033
  %1037 = vrot.lane.b32.xlu0 %v1035, 32
  %v1038 = vpop.permute.xlu0 %1037
  %v1040 = vadd.f32 %v1030, %v1038
  %v1041 = vtanh.pop %v1040
  %1043 = vrot.lane.b32.xlu0 %v1041, 64
  %v1044 = vpop.permute.xlu0 %1043
  %v1046 = vmul.f32 %v1028, %v1044
  %1048 = vrot.lane.b32.xlu0 %v1046, 32
  %v1049 = vpop.permute.xlu0 %1048
  %v1050 = vsel %vm147, %v1049, 0
  %1052 = vmatpush.msra.mxu0 0.0
  %1053 = vmatpush.msra.mxu0 0.0
  %1054 = vmatpush.msra.mxu0 0.0
  %1055 = vmatpush.msra.mxu0 0.0
  %1056 = vmatpush.msra.mxu0 0.0
  %1057 = vmatpush.msra.mxu0 0.0
  %1058 = vmatpush.msra.mxu0 0.0
  %1059 = vmatpush.msra.mxu0 0.0
  %1060 = vmatpush.msra.mxu0 0.0
  %1061 = vmatpush.msra.mxu0 0.0
  %1062 = vmatpush.msra.mxu0 0.0
  %1063 = vmatpush.msra.mxu0 0.0
  %1064 = vmatpush.msra.mxu0 %v52
  %1065 = vmatpush.msra.mxu0 %v50
  %1066 = vmatpush.msra.mxu0 %v48
  %1067 = vmatpush.msra.mxu0 %v46
  %1068 = vmatmul.f32.gmra.mxu0 %v1050
  %v1069 = vpop.f32.mrf.mxu0
  %v1070 = vadd.f32 0.0, %v1069
  %1071 = vdwg.mxu0
  %1072 = vmatpush.msra.mxu0 0.0
  %1073 = vmatpush.msra.mxu0 0.0
  %1074 = vmatpush.msra.mxu0 0.0
  %1075 = vmatpush.msra.mxu0 0.0
  %1076 = vmatpush.msra.mxu0 0.0
  %1077 = vmatpush.msra.mxu0 0.0
  %1078 = vmatpush.msra.mxu0 0.0
  %1079 = vmatpush.msra.mxu0 0.0
  %1080 = vmatpush.msra.mxu0 0.0
  %1081 = vmatpush.msra.mxu0 0.0
  %1082 = vmatpush.msra.mxu0 0.0
  %1083 = vmatpush.msra.mxu0 0.0
  %1084 = vmatpush.msra.mxu0 %v53
  %1085 = vmatpush.msra.mxu0 %v51
  %1086 = vmatpush.msra.mxu0 %v49
  %1087 = vmatpush.msra.mxu0 %v47
  %1088 = vmatmul.f32.gmra.mxu0 %v1050
  %v1089 = vpop.f32.mrf.mxu0
  %v1090 = vadd.f32 0.0, %v1089
  %1091 = vdwg.mxu0
  %v1092 = vadd.f32 %v1090, %v65
  %v1093 = vtanh.pop %v1092
  %v1094 = vadd.f32 %v1070, %v62
  %v1095 = vxor.u32 %v1094, 2147483648
  %v1096 = vmul.f32 %v1095, 1.442695
  %v1097 = vpow.pop %v1096
  %v1098 = vadd.f32 %v1097, 1.0
  %v1099 = vrcp.pop %v1098
  %v1100 = vmul.f32 %v1098, %v1099
  %v1101 = vsub.f32 1.0, %v1100
  %v1102 = vmul.f32 %v1099, %v1101
  %v1103 = vadd.f32 %v1099, %v1102
  %vm1104 = vweird.f32 %v1098
  %vm1105 = vweird.f32 %v1099
  %vm1106 = vmor %vm1104, %vm1105
  %v1107 = vsel %vm1106, %v1099, %v1103
  %v1108 = vand.u32 2147483647, %v1098
  %vm1109 = vcmp.eq.f32.partialorder %v1108, 8.507059e+37
  %v1110 = vand.u32 %v1098, 2147483648
  %v1111 = vor.u32 1.1754944e-38, %v1110
  %v1112 = vsel %vm1109, %v1111, %v1107
  %v1113 = vmul.f32 1.0, %v1112
  %v1114 = vtanh.pop %v1094
  %v1115 = vmul.f32 %v1113, %v1040
  %1117 = vrot.lane.b32.xlu0 %v1114, 64
  %v1118 = vpop.permute.xlu0 %1117
  %v1120 = vmul.f32 %v1113, %v1118
  %1122 = vrot.lane.b32.xlu0 %v1120, 32
  %v1123 = vpop.permute.xlu0 %1122
  %v1125 = vadd.f32 %v1115, %v1123
  %v1126 = vtanh.pop %v1125
  %1128 = vrot.lane.b32.xlu0 %v1126, 64
  %v1129 = vpop.permute.xlu0 %1128
  %v1131 = vmul.f32 %v1113, %v1129
  %1133 = vrot.lane.b32.xlu0 %v1131, 32
  %v1134 = vpop.permute.xlu0 %1133
  %v1135 = vsel %vm147, %v1134, 0
  %1137 = vmatpush.msra.mxu0 0.0
  %1138 = vmatpush.msra.mxu0 0.0
  %1139 = vmatpush.msra.mxu0 0.0
  %1140 = vmatpush.msra.mxu0 0.0
  %1141 = vmatpush.msra.mxu0 0.0
  %1142 = vmatpush.msra.mxu0 0.0
  %1143 = vmatpush.msra.mxu0 0.0
  %1144 = vmatpush.msra.mxu0 0.0
  %1145 = vmatpush.msra.mxu0 0.0
  %1146 = vmatpush.msra.mxu0 0.0
  %1147 = vmatpush.msra.mxu0 0.0
  %1148 = vmatpush.msra.mxu0 0.0
  %1149 = vmatpush.msra.mxu0 %v52
  %1150 = vmatpush.msra.mxu0 %v50
  %1151 = vmatpush.msra.mxu0 %v48
  %1152 = vmatpush.msra.mxu0 %v46
  %1153 = vmatmul.f32.gmra.mxu0 %v1135
  %v1154 = vpop.f32.mrf.mxu0
  %v1155 = vadd.f32 0.0, %v1154
  %1156 = vdwg.mxu0
  %1157 = vmatpush.msra.mxu0 0.0
  %1158 = vmatpush.msra.mxu0 0.0
  %1159 = vmatpush.msra.mxu0 0.0
  %1160 = vmatpush.msra.mxu0 0.0
  %1161 = vmatpush.msra.mxu0 0.0
  %1162 = vmatpush.msra.mxu0 0.0
  %1163 = vmatpush.msra.mxu0 0.0
  %1164 = vmatpush.msra.mxu0 0.0
  %1165 = vmatpush.msra.mxu0 0.0
  %1166 = vmatpush.msra.mxu0 0.0
  %1167 = vmatpush.msra.mxu0 0.0
  %1168 = vmatpush.msra.mxu0 0.0
  %1169 = vmatpush.msra.mxu0 %v53
  %1170 = vmatpush.msra.mxu0 %v51
  %1171 = vmatpush.msra.mxu0 %v49
  %1172 = vmatpush.msra.mxu0 %v47
  %1173 = vmatmul.f32.gmra.mxu0 %v1135
  %v1174 = vpop.f32.mrf.mxu0
  %v1175 = vadd.f32 0.0, %v1174
  %1176 = vdwg.mxu0
  %v1177 = vadd.f32 %v1175, %v65
  %v1178 = vtanh.pop %v1177
  %v1179 = vadd.f32 %v1155, %v62
  %v1180 = vxor.u32 %v1179, 2147483648
  %v1181 = vmul.f32 %v1180, 1.442695
  %v1182 = vpow.pop %v1181
  %v1183 = vadd.f32 %v1182, 1.0
  %v1184 = vrcp.pop %v1183
  %v1185 = vmul.f32 %v1183, %v1184
  %v1186 = vsub.f32 1.0, %v1185
  %v1187 = vmul.f32 %v1184, %v1186
  %v1188 = vadd.f32 %v1184, %v1187
  %vm1189 = vweird.f32 %v1183
  %vm1190 = vweird.f32 %v1184
  %vm1191 = vmor %vm1189, %vm1190
  %v1192 = vsel %vm1191, %v1184, %v1188
  %v1193 = vand.u32 2147483647, %v1183
  %vm1194 = vcmp.eq.f32.partialorder %v1193, 8.507059e+37
  %v1195 = vand.u32 %v1183, 2147483648
  %v1196 = vor.u32 1.1754944e-38, %v1195
  %v1197 = vsel %vm1194, %v1196, %v1192
  %v1198 = vmul.f32 1.0, %v1197
  %v1199 = vtanh.pop %v1179
  %v1200 = vmul.f32 %v1198, %v1125
  %1202 = vrot.lane.b32.xlu0 %v1199, 64
  %v1203 = vpop.permute.xlu0 %1202
  %v1205 = vmul.f32 %v1198, %v1203
  %1207 = vrot.lane.b32.xlu0 %v1205, 32
  %v1208 = vpop.permute.xlu0 %1207
  %v1210 = vadd.f32 %v1200, %v1208
  %v1211 = vtanh.pop %v1210
  %1213 = vrot.lane.b32.xlu0 %v1211, 64
  %v1214 = vpop.permute.xlu0 %1213
  %v1216 = vmul.f32 %v1198, %v1214
  %1218 = vrot.lane.b32.xlu0 %v1216, 32
  %v1219 = vpop.permute.xlu0 %1218
  %v1220 = vsel %vm147, %v1219, 0
  %1222 = vmatpush.msra.mxu0 0.0
  %1223 = vmatpush.msra.mxu0 0.0
  %1224 = vmatpush.msra.mxu0 0.0
  %1225 = vmatpush.msra.mxu0 0.0
  %1226 = vmatpush.msra.mxu0 0.0
  %1227 = vmatpush.msra.mxu0 0.0
  %1228 = vmatpush.msra.mxu0 0.0
  %1229 = vmatpush.msra.mxu0 0.0
  %1230 = vmatpush.msra.mxu0 0.0
  %1231 = vmatpush.msra.mxu0 0.0
  %1232 = vmatpush.msra.mxu0 0.0
  %1233 = vmatpush.msra.mxu0 0.0
  %1234 = vmatpush.msra.mxu0 %v52
  %1235 = vmatpush.msra.mxu0 %v50
  %1236 = vmatpush.msra.mxu0 %v48
  %1237 = vmatpush.msra.mxu0 %v46
  %1238 = vmatmul.f32.gmra.mxu0 %v1220
  %v1239 = vpop.f32.mrf.mxu0
  %v1240 = vadd.f32 0.0, %v1239
  %1241 = vdwg.mxu0
  %1242 = vmatpush.msra.mxu0 0.0
  %1243 = vmatpush.msra.mxu0 0.0
  %1244 = vmatpush.msra.mxu0 0.0
  %1245 = vmatpush.msra.mxu0 0.0
  %1246 = vmatpush.msra.mxu0 0.0
  %1247 = vmatpush.msra.mxu0 0.0
  %1248 = vmatpush.msra.mxu0 0.0
  %1249 = vmatpush.msra.mxu0 0.0
  %1250 = vmatpush.msra.mxu0 0.0
  %1251 = vmatpush.msra.mxu0 0.0
  %1252 = vmatpush.msra.mxu0 0.0
  %1253 = vmatpush.msra.mxu0 0.0
  %1254 = vmatpush.msra.mxu0 %v53
  %1255 = vmatpush.msra.mxu0 %v51
  %1256 = vmatpush.msra.mxu0 %v49
  %1257 = vmatpush.msra.mxu0 %v47
  %1258 = vmatmul.f32.gmra.mxu0 %v1220
  %v1259 = vpop.f32.mrf.mxu0
  %v1260 = vadd.f32 0.0, %v1259
  %1261 = vdwg.mxu0
  %v1262 = vadd.f32 %v1260, %v65
  %v1263 = vtanh.pop %v1262
  %v1264 = vadd.f32 %v1240, %v62
  %v1265 = vxor.u32 %v1264, 2147483648
  %v1266 = vmul.f32 %v1265, 1.442695
  %v1267 = vpow.pop %v1266
  %v1268 = vadd.f32 %v1267, 1.0
  %v1269 = vrcp.pop %v1268
  %v1270 = vmul.f32 %v1268, %v1269
  %v1271 = vsub.f32 1.0, %v1270
  %v1272 = vmul.f32 %v1269, %v1271
  %v1273 = vadd.f32 %v1269, %v1272
  %vm1274 = vweird.f32 %v1268
  %vm1275 = vweird.f32 %v1269
  %vm1276 = vmor %vm1274, %vm1275
  %v1277 = vsel %vm1276, %v1269, %v1273
  %v1278 = vand.u32 2147483647, %v1268
  %vm1279 = vcmp.eq.f32.partialorder %v1278, 8.507059e+37
  %v1280 = vand.u32 %v1268, 2147483648
  %v1281 = vor.u32 1.1754944e-38, %v1280
  %v1282 = vsel %vm1279, %v1281, %v1277
  %v1283 = vmul.f32 1.0, %v1282
  %v1284 = vtanh.pop %v1264
  %v1285 = vmul.f32 %v1283, %v1210
  %1287 = vrot.lane.b32.xlu0 %v1284, 64
  %v1288 = vpop.permute.xlu0 %1287
  %v1290 = vmul.f32 %v1283, %v1288
  %1292 = vrot.lane.b32.xlu0 %v1290, 32
  %v1293 = vpop.permute.xlu0 %1292
  %v1295 = vadd.f32 %v1285, %v1293
  %v1296 = vtanh.pop %v1295
  %1298 = vrot.lane.b32.xlu0 %v1296, 64
  %v1299 = vpop.permute.xlu0 %1298
  %v1301 = vmul.f32 %v1283, %v1299
  %1303 = vrot.lane.b32.xlu0 %v1301, 32
  %v1304 = vpop.permute.xlu0 %1303
  %v1305 = vsel %vm147, %v1304, 0
  %1307 = vmatpush.msra.mxu0 0.0
  %1308 = vmatpush.msra.mxu0 0.0
  %1309 = vmatpush.msra.mxu0 0.0
  %1310 = vmatpush.msra.mxu0 0.0
  %1311 = vmatpush.msra.mxu0 0.0
  %1312 = vmatpush.msra.mxu0 0.0
  %1313 = vmatpush.msra.mxu0 0.0
  %1314 = vmatpush.msra.mxu0 0.0
  %1315 = vmatpush.msra.mxu0 0.0
  %1316 = vmatpush.msra.mxu0 0.0
  %1317 = vmatpush.msra.mxu0 0.0
  %1318 = vmatpush.msra.mxu0 0.0
  %1319 = vmatpush.msra.mxu0 %v59
  %1320 = vmatpush.msra.mxu0 %v58
  %1321 = vmatpush.msra.mxu0 %v57
  %1322 = vmatpush.msra.mxu0 %v56
  %1323 = vmatmul.f32.gmra.mxu0 %v1305
  %v1324 = vpop.f32.mrf.mxu0
  %v1325 = vadd.f32 %v65, %v1324
  %1326 = vdwg.mxu0
  %v1327 = vtanh.pop %v1325
  %1329 = vrot.lane.b32.xlu0 %v838, 16
  %v1330 = vpop.permute.xlu0 %1329
  %1333 = vrot.lane.b32.xlu0 %v923, 32
  %v1334 = vpop.permute.xlu0 %1333
  %1337 = vrot.lane.b32.xlu0 %v1008, 48
  %v1338 = vpop.permute.xlu0 %1337
  %1341 = vrot.lane.b32.xlu0 %v1093, 64
  %v1342 = vpop.permute.xlu0 %1341
  %1345 = vrot.lane.b32.xlu0 %v1178, 80
  %v1346 = vpop.permute.xlu0 %1345
  %1349 = vrot.lane.b32.xlu0 %v1263, 96
  %v1350 = vpop.permute.xlu0 %1349
  %1353 = vrot.lane.b32.xlu0 %v1327, 112
  %v1354 = vpop.permute.xlu0 %1353
  %v1356 = vsel %vm81, %v753, %v1330
  %v1357 = vsel %vm147, %v1356, %v1334
  %vm1358 = vcmask 392192
  %v1359 = vsel %vm1358, %v1357, %v1338
  %vm1360 = vcmask 523264
  %v1361 = vsel %vm1360, %v1359, %v1342
  %vm1362 = vcmask 654336
  %v1363 = vsel %vm1362, %v1361, %v1346
  %vm1364 = vcmask 785408
  %v1365 = vsel %vm1364, %v1363, %v1350
  %vm1366 = vcmask 916480
  %v1367 = vsel %vm1366, %v1365, %v1354
  %1368 = vst [vmem:[%s10] sm:$0xff] %v1367
  // Predicated region
  $region42: #{lstm_autoencoder.1} parent=0 // pred_check
    _
  $region43: #{lstm_autoencoder.1} parent=0 // pred_check_branch
    %1370 = sbr.rel (0) target = $region45
  $region44: #{lstm_autoencoder.1} parent=0 // pred_region
    _
  $region45: #{lstm_autoencoder.1} parent=0 // pred_fallthru
    _
  // Predicated region
  $region46: #{lstm_autoencoder.1} parent=0 // pred_check
    _
  $region47: #{lstm_autoencoder.1} parent=0 // pred_check_branch
    %1372 = sbr.rel (0) target = $region49
  $region48: #{lstm_autoencoder.1} parent=0 // pred_region
    _
  $region49: #{lstm_autoencoder.1} parent=0 // pred_fallthru
    _

</llo_original>
